<compile_context>
chip_gen: v6e
topology: v6e:2x2x1
jax: 0.10.0
libtpu: 0.0.40
codegen_flags: <defaults>
</compile_context>

<pallas_src>
import functools

import jax
import jax.numpy as jnp
from jax.experimental import pallas as pl
from jax.experimental.pallas import tpu as pltpu


def _round_up(n, m):
    return ((n + m - 1) // m) * m


def _pick_time_block(S, max_tt=16):
    """Largest divisor of S that is <= max_tt (timesteps per grid step)."""
    tt = min(S, max_tt)
    while S % tt:
        tt -= 1
    return max(tt, 1)


def _pick_batch_block(Bp, max_bb=256):
    """Largest multiple-of-8 divisor of Bp <= max_bb; split big batches in two
    so the v7x megacore has >= 2 'parallel' blocks to shard."""
    bb = min(Bp, max_bb)
    while Bp % bb or bb % 8:
        bb -= 8
    if Bp // bb < 2 and Bp >= 256 and Bp % 32 == 0:
        bb = Bp // 2
    return max(bb, 8)


def _rnn_classifier_kernel(num_layers, time_block, *refs):
    """Tt timesteps of the multi-layer tanh RNN (grid axis 1 = time blocks)."""
    if num_layers > 1:
        (x_ref, wih0_ref, wihr_ref, whh_ref, b_ref, wfc_ref, bfc_ref,
         out_ref, h_ref) = refs
    else:
        (x_ref, wih0_ref, whh_ref, b_ref, wfc_ref, bfc_ref,
         out_ref, h_ref) = refs
        wihr_ref = None

    tt = pl.program_id(1)

    @pl.when(tt == 0)
    def _init():
        h_ref[...] = jnp.zeros_like(h_ref)

    # Hoist weight/bias loads out of the unrolled timestep loop.
    w_ih = [wih0_ref[...]] + ([wihr_ref[l] for l in range(num_layers - 1)]
                              if num_layers > 1 else [])
    w_hh = [whh_ref[l] for l in range(num_layers)]
    bias = [b_ref[l] for l in range(num_layers)]            # (1, Hp) f32 each

    def step(i, carry):
        inp = x_ref[i]                                      # (tb, Dp) bf16
        for l in range(num_layers):
            h_prev = h_ref[l]                               # (tb, Hp) f32
            # Two accumulating MXU dots (no concat on the serial path):
            # bf16 operands, f32 accumulation, f32 bias/tanh/state carry.
            pre = (jnp.dot(inp, w_ih[l], preferred_element_type=jnp.float32)
                   + jnp.dot(h_prev.astype(jnp.bfloat16), w_hh[l],
                             preferred_element_type=jnp.float32)
                   + bias[l])
            h_new = jnp.tanh(pre)
            h_ref[l] = h_new
            inp = h_new.astype(jnp.bfloat16)
        return carry

    jax.lax.fori_loop(0, time_block, step, 0, unroll=True)

    @pl.when(tt == pl.num_programs(1) - 1)
    def _final():
        out_ref[...] = (jnp.dot(h_ref[num_layers - 1].astype(jnp.bfloat16),
                                wfc_ref[...],
                                preferred_element_type=jnp.float32)
                        + bfc_ref[...])


def rnn_classifier_forward(x, wih0, wihr, whh, b, wfc, bfc, *, num_layers,
                           batch_block=None, time_block=None):
    """x: (B, S, D) batch_first float32. Returns (B, num_classes) float32."""
    B, S, D = x.shape
    H = whh.shape[-1]
    C = wfc.shape[-1]
    f32, bf16 = jnp.float32, jnp.bfloat16

    # Pad to vreg/MXU geometry: sublane-aligned batch, lane-dense D/H/C.
    Bp = _round_up(B, 8)
    Dp = _round_up(D, 128)
    Hp = _round_up(H, 128)
    Cp = _round_up(C, 128)

    if batch_block is None:
        batch_block = _pick_batch_block(Bp)
    assert Bp % batch_block == 0
    nb = Bp // batch_block

    if time_block is None:
        time_block = _pick_time_block(S)
    assert S % time_block == 0
    nt = S // time_block

    # Pad + cast + time-major reorder: one fused XLA copy (bf16 halves x bytes).
    x_p = jnp.pad(x.astype(f32), ((0, Bp - B), (0, 0), (0, Dp - D)))
    x_tm = jnp.transpose(x_p, (1, 0, 2)).astype(bf16)       # (S, Bp, Dp) bf16

    def pad2(w, r, c, dt):
        return jnp.pad(w.astype(f32),
                       ((0, r - w.shape[0]), (0, c - w.shape[1]))).astype(dt)

    wih0_p = pad2(wih0, Dp, Hp, bf16)                                   # (Dp, Hp)
    whh_p = jnp.stack([pad2(whh[l], Hp, Hp, bf16) for l in range(num_layers)])
    b_p = jnp.pad(b.astype(f32), ((0, 0), (0, 0), (0, Hp - H)))         # (L,1,Hp)
    wfc_p = pad2(wfc, Hp, Cp, bf16)                                     # (Hp,Cp)
    bfc_p = jnp.pad(bfc.astype(f32), ((0, 0), (0, Cp - C)))             # (1,Cp)

    def resident(shape):
        n = len(shape)
        return pl.BlockSpec(tuple(shape), lambda bb_, tt_, _n=n: (0,) * _n)

    in_specs = [
        pl.BlockSpec((time_block, batch_block, Dp), lambda bb_, tt_: (tt_, bb_, 0)),
        resident((Dp, Hp)),
    ]
    args = [x_tm, wih0_p]
    if num_layers > 1:
        wihr_p = jnp.stack([pad2(wihr[l], Hp, Hp, bf16)
                            for l in range(num_layers - 1)])            # (L-1,Hp,Hp)
        in_specs.append(resident((num_layers - 1, Hp, Hp)))
        args.append(wihr_p)
    in_specs += [resident((num_layers, Hp, Hp)),
                 resident((num_layers, 1, Hp)),
                 resident((Hp, Cp)),
                 resident((1, Cp))]
    args += [whh_p, b_p, wfc_p, bfc_p]
    # TODO(synk): if resident per-layer weights exceed ~40 MiB (large H / L on
    # v7x's 64 MiB VMEM), keep W_ih/W_hh in HBM (memory_space=pl.ANY) and
    # double-buffer them per layer with pltpu.make_async_copy instead.

    out_spec = pl.BlockSpec((batch_block, Cp), lambda bb_, tt_: (bb_, 0))

    # Generation-aware VMEM budget: ~3/4 of physical per-core VMEM
    # (~96 MiB on v5e/v6e, ~48 MiB on v7x) so Mosaic keeps internal headroom.
    try:
        vmem_cap = int(pltpu.get_tpu_info().vmem_capacity_bytes)
    except Exception:
        vmem_cap = 64 << 20
    vmem_budget = (vmem_cap * 3) // 4

    weight_bytes = 2 * (Dp * Hp + max(num_layers - 1, 0) * Hp * Hp
                        + num_layers * Hp * Hp + Hp * Cp)               # bf16
    bias_bytes = 4 * (num_layers * Hp + Cp)                             # f32
    est_bytes = (2 * time_block * batch_block * Dp * 2    # x (double-buffered bf16)
                 + 2 * (weight_bytes + bias_bytes)        # resident (assume 2x bufs)
                 + 2 * batch_block * Cp * 4               # out
                 + num_layers * batch_block * Hp * 4)     # hidden scratch
    vmem_limit = int(min(max(2 * est_bytes, 16 << 20), vmem_budget))

    kernel = functools.partial(_rnn_classifier_kernel, num_layers, time_block)
    out_p = pl.pallas_call(
        kernel,
        grid=(nb, nt),
        out_shape=jax.ShapeDtypeStruct((Bp, Cp), f32),
        in_specs=in_specs,
        out_specs=out_spec,
        scratch_shapes=[pltpu.VMEM((num_layers, batch_block, Hp), f32)],
        compiler_params=pltpu.CompilerParams(
            dimension_semantics=("parallel", "arbitrary"),
            vmem_limit_bytes=vmem_limit),
    )(*args)
    return out_p[:B, :C]


def _reference_forward(x, wih0, wihr, whh, b, wfc, bfc, *, num_layers):
    """Pure-JAX f32 reference with identical math (for correctness check)."""
    B, S, D = x.shape
    H = whh.shape[-1]
    hs = [jnp.zeros((B, H), jnp.float32) for _ in range(num_layers)]
    for t in range(S):
        inp = x[:, t, :]
        for l in range(num_layers):
            w_ih = wih0 if l == 0 else wihr[l - 1]
            hs[l] = jnp.tanh(inp @ w_ih + hs[l] @ whh[l] + b[l])
            inp = hs[l]
    return hs[-1] @ wfc + bfc


def init_params(key, input_dim, hidden_dim, num_layers, num_classes):
    """Deterministic synthetic init (PyTorch-style uniform(-1/sqrt(H), 1/sqrt(H)))."""
    bound = 1.0 / jnp.sqrt(jnp.float32(hidden_dim))
    ks = jax.random.split(key, 6)
    wih0 = jax.random.uniform(ks[0], (input_dim, hidden_dim), jnp.float32,
                              -bound, bound)
    if num_layers > 1:
        wihr = jax.random.uniform(ks[1], (num_layers - 1, hidden_dim, hidden_dim),
                                  jnp.float32, -bound, bound)
    else:
        wihr = None
    whh = jax.random.uniform(ks[2], (num_layers, hidden_dim, hidden_dim),
                             jnp.float32, -bound, bound)
    # combined bias b_ih + b_hh (synthetic stand-in), kept (L,1,H) for layout
    b = jax.random.uniform(ks[3], (num_layers, 1, hidden_dim), jnp.float32,
                           -2 * bound, 2 * bound)
    wfc = jax.random.uniform(ks[4], (hidden_dim, num_classes), jnp.float32,
                             -bound, bound)
    bfc = jax.random.uniform(ks[5], (1, num_classes), jnp.float32,
                             -bound, bound)
    return wih0, wihr, whh, b, wfc, bfc


if __name__ == "__main__":
    batch, seq, input_dim = 2, 8, 16
    hidden_dim, num_layers, num_classes = 32, 2, 4

    key = jax.random.PRNGKey(0)
    kx, kp = jax.random.split(key)
    x = jax.random.normal(kx, (batch, seq, input_dim), jnp.float32)
    params = init_params(kp, input_dim, hidden_dim, num_layers, num_classes)

    out = rnn_classifier_forward(x, *params, num_layers=num_layers)
    out = jax.block_until_ready(out)

    ref = _reference_forward(x, *params, num_layers=num_layers)
    assert out.shape == (batch, num_classes)
    # bf16 MXU operands (f32 accumulation / state carry) -> relaxed tolerance.
    max_err = float(jnp.max(jnp.abs(out - ref)))
    assert max_err < 5e-2, f"mismatch vs reference (max abs err {max_err})"

    print("KERNEL_OK")
</pallas_src>

<mosaic_0001>
module attributes {stable_mosaic.version = 11 : i64} {
  func.func @_rnn_classifier_kernel(%arg0: i32, %arg1: i32, %arg2: memref<8x8x128xbf16, #tpu.memory_space<vmem>>, %arg3: memref<128x128xbf16, #tpu.memory_space<vmem>>, %arg4: memref<1x128x128xbf16, #tpu.memory_space<vmem>>, %arg5: memref<2x128x128xbf16, #tpu.memory_space<vmem>>, %arg6: memref<2x1x128xf32, #tpu.memory_space<vmem>>, %arg7: memref<128x128xbf16, #tpu.memory_space<vmem>>, %arg8: memref<1x128xf32, #tpu.memory_space<vmem>>, %arg9: memref<8x128xf32, #tpu.memory_space<vmem>>, %arg10: memref<2x8x128xf32, #tpu.memory_space<vmem>>) attributes {dimension_semantics = [#tpu.dimension_semantics<parallel>, #tpu.dimension_semantics<arbitrary>], iteration_bounds = array<i64: 1, 1>, scalar_prefetch = 0 : i64, scratch_operands = 1 : i64, tpu.core_type = #tpu.core_type<tc>, window_params = [{transform_indices = @transform_0, window_bounds = array<i64: 8, 8, 128>}, {pipeline_mode = #tpu.pipeline_mode<synchronous>, transform_indices = @transform_1, window_bounds = array<i64: 128, 128>}, {pipeline_mode = #tpu.pipeline_mode<synchronous>, transform_indices = @transform_2, window_bounds = array<i64: 1, 128, 128>}, {pipeline_mode = #tpu.pipeline_mode<synchronous>, transform_indices = @transform_3, window_bounds = array<i64: 2, 128, 128>}, {pipeline_mode = #tpu.pipeline_mode<synchronous>, transform_indices = @transform_4, window_bounds = array<i64: 2, 1, 128>}, {pipeline_mode = #tpu.pipeline_mode<synchronous>, transform_indices = @transform_5, window_bounds = array<i64: 128, 128>}, {pipeline_mode = #tpu.pipeline_mode<synchronous>, transform_indices = @transform_6, window_bounds = array<i64: 1, 128>}, {transform_indices = @transform_7, window_bounds = array<i64: 8, 128>}]} {
    %c0_i32 = arith.constant 0 : i32
    %0 = arith.cmpi eq, %arg1, %c0_i32 : i32
    %1 = arith.extui %0 : i1 to i32
    %c0_i32_0 = arith.constant 0 : i32
    %2 = arith.cmpi ne, %1, %c0_i32_0 : i32
    scf.if %2 {
      %cst_162 = arith.constant 0.000000e+00 : f32
      %241 = vector.broadcast %cst_162 : f32 to vector<2x8x128xf32>
      %c0_163 = arith.constant 0 : index
      %c0_164 = arith.constant 0 : index
      %c0_165 = arith.constant 0 : index
      %242 = vector.load %arg10[%c0_163, %c0_164, %c0_165] : memref<2x8x128xf32, #tpu.memory_space<vmem>>, vector<2x8x128xf32>
      tpu.vector_store %arg10[%c0_163, %c0_164, %c0_165], %241 {strides = array<i32>} : memref<2x8x128xf32, #tpu.memory_space<vmem>>, vector<2x8x128xf32>,
    } else {
    }
    %c0 = arith.constant 0 : index
    %c0_1 = arith.constant 0 : index
    %3 = vector.load %arg3[%c0, %c0_1] : memref<128x128xbf16, #tpu.memory_space<vmem>>, vector<128x128xbf16>
    %c0_2 = arith.constant 0 : index
    %c0_3 = arith.constant 0 : index
    %c0_4 = arith.constant 0 : index
    %4 = vector.load %arg4[%c0_2, %c0_3, %c0_4] : memref<1x128x128xbf16, #tpu.memory_space<vmem>>, vector<1x128x128xbf16>
    %5 = vector.shape_cast %4 : vector<1x128x128xbf16> to vector<128x128xbf16>
    %c0_5 = arith.constant 0 : index
    %c0_6 = arith.constant 0 : index
    %c0_7 = arith.constant 0 : index
    %6 = vector.load %arg5[%c0_5, %c0_6, %c0_7] : memref<2x128x128xbf16, #tpu.memory_space<vmem>>, vector<1x128x128xbf16>
    %7 = vector.shape_cast %6 : vector<1x128x128xbf16> to vector<128x128xbf16>
    %c1 = arith.constant 1 : index
    %c0_8 = arith.constant 0 : index
    %c0_9 = arith.constant 0 : index
    %8 = vector.load %arg5[%c1, %c0_8, %c0_9] : memref<2x128x128xbf16, #tpu.memory_space<vmem>>, vector<1x128x128xbf16>
    %9 = vector.shape_cast %8 : vector<1x128x128xbf16> to vector<128x128xbf16>
    %c0_10 = arith.constant 0 : index
    %c0_11 = arith.constant 0 : index
    %c0_12 = arith.constant 0 : index
    %10 = vector.load %arg6[%c0_10, %c0_11, %c0_12] : memref<2x1x128xf32, #tpu.memory_space<vmem>>, vector<1x1x128xf32>
    %11 = vector.shape_cast %10 : vector<1x1x128xf32> to vector<1x128xf32>
    %c1_13 = arith.constant 1 : index
    %c0_14 = arith.constant 0 : index
    %c0_15 = arith.constant 0 : index
    %12 = vector.load %arg6[%c1_13, %c0_14, %c0_15] : memref<2x1x128xf32, #tpu.memory_space<vmem>>, vector<1x1x128xf32>
    %13 = vector.shape_cast %12 : vector<1x1x128xf32> to vector<1x128xf32>
    %c0_i32_16 = arith.constant 0 : i32
    %14 = arith.index_cast %c0_i32_16 : i32 to index
    %c0_17 = arith.constant 0 : index
    %c0_18 = arith.constant 0 : index
    %15 = vector.load %arg2[%14, %c0_17, %c0_18] : memref<8x8x128xbf16, #tpu.memory_space<vmem>>, vector<1x8x128xbf16>
    %16 = vector.shape_cast %15 : vector<1x8x128xbf16> to vector<8x128xbf16>
    %c0_19 = arith.constant 0 : index
    %c0_20 = arith.constant 0 : index
    %c0_21 = arith.constant 0 : index
    %17 = vector.load %arg10[%c0_19, %c0_20, %c0_21] : memref<2x8x128xf32, #tpu.memory_space<vmem>>, vector<1x8x128xf32>
    %18 = vector.shape_cast %17 : vector<1x8x128xf32> to vector<8x128xf32>
    %cst = arith.constant dense<0.000000e+00> : vector<8x128xf32>
    %19 = tpu.matmul %16, %3, %cst {dimension_numbers = #tpu.dot_dimension_numbers<[1], [0], [0], [1], [0, 0, 1, 1], [], []>} : vector<8x128xbf16>, vector<128x128xbf16>, vector<8x128xf32> -> vector<8x128xf32>
    %20 = arith.truncf %18 : vector<8x128xf32> to vector<8x128xbf16>
    %cst_22 = arith.constant dense<0.000000e+00> : vector<8x128xf32>
    %21 = tpu.matmul %20, %7, %cst_22 {dimension_numbers = #tpu.dot_dimension_numbers<[1], [0], [0], [1], [0, 0, 1, 1], [], []>} : vector<8x128xbf16>, vector<128x128xbf16>, vector<8x128xf32> -> vector<8x128xf32>
    %22 = arith.addf %19, %21 : vector<8x128xf32>
    %23 = vector.broadcast %11 : vector<1x128xf32> to vector<8x128xf32>
    %24 = arith.addf %22, %23 : vector<8x128xf32>
    %25 = math.tanh %24 : vector<8x128xf32>
    %c0_23 = arith.constant 0 : index
    %c0_24 = arith.constant 0 : index
    %c0_25 = arith.constant 0 : index
    %26 = vector.load %arg10[%c0_23, %c0_24, %c0_25] : memref<2x8x128xf32, #tpu.memory_space<vmem>>, vector<1x8x128xf32>
    %27 = vector.shape_cast %26 : vector<1x8x128xf32> to vector<8x128xf32>
    %28 = vector.shape_cast %25 : vector<8x128xf32> to vector<1x8x128xf32>
    tpu.vector_store %arg10[%c0_23, %c0_24, %c0_25], %28 {strides = array<i32>} : memref<2x8x128xf32, #tpu.memory_space<vmem>>, vector<1x8x128xf32>,
    %29 = arith.truncf %25 : vector<8x128xf32> to vector<8x128xbf16>
    %c1_26 = arith.constant 1 : index
    %c0_27 = arith.constant 0 : index
    %c0_28 = arith.constant 0 : index
    %30 = vector.load %arg10[%c1_26, %c0_27, %c0_28] : memref<2x8x128xf32, #tpu.memory_space<vmem>>, vector<1x8x128xf32>
    %31 = vector.shape_cast %30 : vector<1x8x128xf32> to vector<8x128xf32>
    %cst_29 = arith.constant dense<0.000000e+00> : vector<8x128xf32>
    %32 = tpu.matmul %29, %5, %cst_29 {dimension_numbers = #tpu.dot_dimension_numbers<[1], [0], [0], [1], [0, 0, 1, 1], [], []>} : vector<8x128xbf16>, vector<128x128xbf16>, vector<8x128xf32> -> vector<8x128xf32>
    %33 = arith.truncf %31 : vector<8x128xf32> to vector<8x128xbf16>
    %cst_30 = arith.constant dense<0.000000e+00> : vector<8x128xf32>
    %34 = tpu.matmul %33, %9, %cst_30 {dimension_numbers = #tpu.dot_dimension_numbers<[1], [0], [0], [1], [0, 0, 1, 1], [], []>} : vector<8x128xbf16>, vector<128x128xbf16>, vector<8x128xf32> -> vector<8x128xf32>
    %35 = arith.addf %32, %34 : vector<8x128xf32>
    %36 = vector.broadcast %13 : vector<1x128xf32> to vector<8x128xf32>
    %37 = arith.addf %35, %36 : vector<8x128xf32>
    %38 = math.tanh %37 : vector<8x128xf32>
    %c1_31 = arith.constant 1 : index
    %c0_32 = arith.constant 0 : index
    %c0_33 = arith.constant 0 : index
    %39 = vector.load %arg10[%c1_31, %c0_32, %c0_33] : memref<2x8x128xf32, #tpu.memory_space<vmem>>, vector<1x8x128xf32>
    %40 = vector.shape_cast %39 : vector<1x8x128xf32> to vector<8x128xf32>
    %41 = vector.shape_cast %38 : vector<8x128xf32> to vector<1x8x128xf32>
    tpu.vector_store %arg10[%c1_31, %c0_32, %c0_33], %41 {strides = array<i32>} : memref<2x8x128xf32, #tpu.memory_space<vmem>>, vector<1x8x128xf32>,
    %c1_i32 = arith.constant 1 : i32
    %42 = arith.index_cast %c1_i32 : i32 to index
    %c0_34 = arith.constant 0 : index
    %c0_35 = arith.constant 0 : index
    %43 = vector.load %arg2[%42, %c0_34, %c0_35] : memref<8x8x128xbf16, #tpu.memory_space<vmem>>, vector<1x8x128xbf16>
    %44 = vector.shape_cast %43 : vector<1x8x128xbf16> to vector<8x128xbf16>
    %c0_36 = arith.constant 0 : index
    %c0_37 = arith.constant 0 : index
    %c0_38 = arith.constant 0 : index
    %45 = vector.load %arg10[%c0_36, %c0_37, %c0_38] : memref<2x8x128xf32, #tpu.memory_space<vmem>>, vector<1x8x128xf32>
    %46 = vector.shape_cast %45 : vector<1x8x128xf32> to vector<8x128xf32>
    %cst_39 = arith.constant dense<0.000000e+00> : vector<8x128xf32>
    %47 = tpu.matmul %44, %3, %cst_39 {dimension_numbers = #tpu.dot_dimension_numbers<[1], [0], [0], [1], [0, 0, 1, 1], [], []>} : vector<8x128xbf16>, vector<128x128xbf16>, vector<8x128xf32> -> vector<8x128xf32>
    %48 = arith.truncf %46 : vector<8x128xf32> to vector<8x128xbf16>
    %cst_40 = arith.constant dense<0.000000e+00> : vector<8x128xf32>
    %49 = tpu.matmul %48, %7, %cst_40 {dimension_numbers = #tpu.dot_dimension_numbers<[1], [0], [0], [1], [0, 0, 1, 1], [], []>} : vector<8x128xbf16>, vector<128x128xbf16>, vector<8x128xf32> -> vector<8x128xf32>
    %50 = arith.addf %47, %49 : vector<8x128xf32>
    %51 = vector.broadcast %11 : vector<1x128xf32> to vector<8x128xf32>
    %52 = arith.addf %50, %51 : vector<8x128xf32>
    %53 = math.tanh %52 : vector<8x128xf32>
    %c0_41 = arith.constant 0 : index
    %c0_42 = arith.constant 0 : index
    %c0_43 = arith.constant 0 : index
    %54 = vector.load %arg10[%c0_41, %c0_42, %c0_43] : memref<2x8x128xf32, #tpu.memory_space<vmem>>, vector<1x8x128xf32>
    %55 = vector.shape_cast %54 : vector<1x8x128xf32> to vector<8x128xf32>
    %56 = vector.shape_cast %53 : vector<8x128xf32> to vector<1x8x128xf32>
    tpu.vector_store %arg10[%c0_41, %c0_42, %c0_43], %56 {strides = array<i32>} : memref<2x8x128xf32, #tpu.memory_space<vmem>>, vector<1x8x128xf32>,
    %57 = arith.truncf %53 : vector<8x128xf32> to vector<8x128xbf16>
    %c1_44 = arith.constant 1 : index
    %c0_45 = arith.constant 0 : index
    %c0_46 = arith.constant 0 : index
    %58 = vector.load %arg10[%c1_44, %c0_45, %c0_46] : memref<2x8x128xf32, #tpu.memory_space<vmem>>, vector<1x8x128xf32>
    %59 = vector.shape_cast %58 : vector<1x8x128xf32> to vector<8x128xf32>
    %cst_47 = arith.constant dense<0.000000e+00> : vector<8x128xf32>
    %60 = tpu.matmul %57, %5, %cst_47 {dimension_numbers = #tpu.dot_dimension_numbers<[1], [0], [0], [1], [0, 0, 1, 1], [], []>} : vector<8x128xbf16>, vector<128x128xbf16>, vector<8x128xf32> -> vector<8x128xf32>
    %61 = arith.truncf %59 : vector<8x128xf32> to vector<8x128xbf16>
    %cst_48 = arith.constant dense<0.000000e+00> : vector<8x128xf32>
    %62 = tpu.matmul %61, %9, %cst_48 {dimension_numbers = #tpu.dot_dimension_numbers<[1], [0], [0], [1], [0, 0, 1, 1], [], []>} : vector<8x128xbf16>, vector<128x128xbf16>, vector<8x128xf32> -> vector<8x128xf32>
    %63 = arith.addf %60, %62 : vector<8x128xf32>
    %64 = vector.broadcast %13 : vector<1x128xf32> to vector<8x128xf32>
    %65 = arith.addf %63, %64 : vector<8x128xf32>
    %66 = math.tanh %65 : vector<8x128xf32>
    %c1_49 = arith.constant 1 : index
    %c0_50 = arith.constant 0 : index
    %c0_51 = arith.constant 0 : index
    %67 = vector.load %arg10[%c1_49, %c0_50, %c0_51] : memref<2x8x128xf32, #tpu.memory_space<vmem>>, vector<1x8x128xf32>
    %68 = vector.shape_cast %67 : vector<1x8x128xf32> to vector<8x128xf32>
    %69 = vector.shape_cast %66 : vector<8x128xf32> to vector<1x8x128xf32>
    tpu.vector_store %arg10[%c1_49, %c0_50, %c0_51], %69 {strides = array<i32>} : memref<2x8x128xf32, #tpu.memory_space<vmem>>, vector<1x8x128xf32>,
    %c2_i32 = arith.constant 2 : i32
    %70 = arith.index_cast %c2_i32 : i32 to index
    %c0_52 = arith.constant 0 : index
    %c0_53 = arith.constant 0 : index
    %71 = vector.load %arg2[%70, %c0_52, %c0_53] : memref<8x8x128xbf16, #tpu.memory_space<vmem>>, vector<1x8x128xbf16>
    %72 = vector.shape_cast %71 : vector<1x8x128xbf16> to vector<8x128xbf16>
    %c0_54 = arith.constant 0 : index
    %c0_55 = arith.constant 0 : index
    %c0_56 = arith.constant 0 : index
    %73 = vector.load %arg10[%c0_54, %c0_55, %c0_56] : memref<2x8x128xf32, #tpu.memory_space<vmem>>, vector<1x8x128xf32>
    %74 = vector.shape_cast %73 : vector<1x8x128xf32> to vector<8x128xf32>
    %cst_57 = arith.constant dense<0.000000e+00> : vector<8x128xf32>
    %75 = tpu.matmul %72, %3, %cst_57 {dimension_numbers = #tpu.dot_dimension_numbers<[1], [0], [0], [1], [0, 0, 1, 1], [], []>} : vector<8x128xbf16>, vector<128x128xbf16>, vector<8x128xf32> -> vector<8x128xf32>
    %76 = arith.truncf %74 : vector<8x128xf32> to vector<8x128xbf16>
    %cst_58 = arith.constant dense<0.000000e+00> : vector<8x128xf32>
    %77 = tpu.matmul %76, %7, %cst_58 {dimension_numbers = #tpu.dot_dimension_numbers<[1], [0], [0], [1], [0, 0, 1, 1], [], []>} : vector<8x128xbf16>, vector<128x128xbf16>, vector<8x128xf32> -> vector<8x128xf32>
    %78 = arith.addf %75, %77 : vector<8x128xf32>
    %79 = vector.broadcast %11 : vector<1x128xf32> to vector<8x128xf32>
    %80 = arith.addf %78, %79 : vector<8x128xf32>
    %81 = math.tanh %80 : vector<8x128xf32>
    %c0_59 = arith.constant 0 : index
    %c0_60 = arith.constant 0 : index
    %c0_61 = arith.constant 0 : index
    %82 = vector.load %arg10[%c0_59, %c0_60, %c0_61] : memref<2x8x128xf32, #tpu.memory_space<vmem>>, vector<1x8x128xf32>
    %83 = vector.shape_cast %82 : vector<1x8x128xf32> to vector<8x128xf32>
    %84 = vector.shape_cast %81 : vector<8x128xf32> to vector<1x8x128xf32>
    tpu.vector_store %arg10[%c0_59, %c0_60, %c0_61], %84 {strides = array<i32>} : memref<2x8x128xf32, #tpu.memory_space<vmem>>, vector<1x8x128xf32>,
    %85 = arith.truncf %81 : vector<8x128xf32> to vector<8x128xbf16>
    %c1_62 = arith.constant 1 : index
    %c0_63 = arith.constant 0 : index
    %c0_64 = arith.constant 0 : index
    %86 = vector.load %arg10[%c1_62, %c0_63, %c0_64] : memref<2x8x128xf32, #tpu.memory_space<vmem>>, vector<1x8x128xf32>
    %87 = vector.shape_cast %86 : vector<1x8x128xf32> to vector<8x128xf32>
    %cst_65 = arith.constant dense<0.000000e+00> : vector<8x128xf32>
    %88 = tpu.matmul %85, %5, %cst_65 {dimension_numbers = #tpu.dot_dimension_numbers<[1], [0], [0], [1], [0, 0, 1, 1], [], []>} : vector<8x128xbf16>, vector<128x128xbf16>, vector<8x128xf32> -> vector<8x128xf32>
    %89 = arith.truncf %87 : vector<8x128xf32> to vector<8x128xbf16>
    %cst_66 = arith.constant dense<0.000000e+00> : vector<8x128xf32>
    %90 = tpu.matmul %89, %9, %cst_66 {dimension_numbers = #tpu.dot_dimension_numbers<[1], [0], [0], [1], [0, 0, 1, 1], [], []>} : vector<8x128xbf16>, vector<128x128xbf16>, vector<8x128xf32> -> vector<8x128xf32>
    %91 = arith.addf %88, %90 : vector<8x128xf32>
    %92 = vector.broadcast %13 : vector<1x128xf32> to vector<8x128xf32>
    %93 = arith.addf %91, %92 : vector<8x128xf32>
    %94 = math.tanh %93 : vector<8x128xf32>
    %c1_67 = arith.constant 1 : index
    %c0_68 = arith.constant 0 : index
    %c0_69 = arith.constant 0 : index
    %95 = vector.load %arg10[%c1_67, %c0_68, %c0_69] : memref<2x8x128xf32, #tpu.memory_space<vmem>>, vector<1x8x128xf32>
    %96 = vector.shape_cast %95 : vector<1x8x128xf32> to vector<8x128xf32>
    %97 = vector.shape_cast %94 : vector<8x128xf32> to vector<1x8x128xf32>
    tpu.vector_store %arg10[%c1_67, %c0_68, %c0_69], %97 {strides = array<i32>} : memref<2x8x128xf32, #tpu.memory_space<vmem>>, vector<1x8x128xf32>,
    %c3_i32 = arith.constant 3 : i32
    %98 = arith.index_cast %c3_i32 : i32 to index
    %c0_70 = arith.constant 0 : index
    %c0_71 = arith.constant 0 : index
    %99 = vector.load %arg2[%98, %c0_70, %c0_71] : memref<8x8x128xbf16, #tpu.memory_space<vmem>>, vector<1x8x128xbf16>
    %100 = vector.shape_cast %99 : vector<1x8x128xbf16> to vector<8x128xbf16>
    %c0_72 = arith.constant 0 : index
    %c0_73 = arith.constant 0 : index
    %c0_74 = arith.constant 0 : index
    %101 = vector.load %arg10[%c0_72, %c0_73, %c0_74] : memref<2x8x128xf32, #tpu.memory_space<vmem>>, vector<1x8x128xf32>
    %102 = vector.shape_cast %101 : vector<1x8x128xf32> to vector<8x128xf32>
    %cst_75 = arith.constant dense<0.000000e+00> : vector<8x128xf32>
    %103 = tpu.matmul %100, %3, %cst_75 {dimension_numbers = #tpu.dot_dimension_numbers<[1], [0], [0], [1], [0, 0, 1, 1], [], []>} : vector<8x128xbf16>, vector<128x128xbf16>, vector<8x128xf32> -> vector<8x128xf32>
    %104 = arith.truncf %102 : vector<8x128xf32> to vector<8x128xbf16>
    %cst_76 = arith.constant dense<0.000000e+00> : vector<8x128xf32>
    %105 = tpu.matmul %104, %7, %cst_76 {dimension_numbers = #tpu.dot_dimension_numbers<[1], [0], [0], [1], [0, 0, 1, 1], [], []>} : vector<8x128xbf16>, vector<128x128xbf16>, vector<8x128xf32> -> vector<8x128xf32>
    %106 = arith.addf %103, %105 : vector<8x128xf32>
    %107 = vector.broadcast %11 : vector<1x128xf32> to vector<8x128xf32>
    %108 = arith.addf %106, %107 : vector<8x128xf32>
    %109 = math.tanh %108 : vector<8x128xf32>
    %c0_77 = arith.constant 0 : index
    %c0_78 = arith.constant 0 : index
    %c0_79 = arith.constant 0 : index
    %110 = vector.load %arg10[%c0_77, %c0_78, %c0_79] : memref<2x8x128xf32, #tpu.memory_space<vmem>>, vector<1x8x128xf32>
    %111 = vector.shape_cast %110 : vector<1x8x128xf32> to vector<8x128xf32>
    %112 = vector.shape_cast %109 : vector<8x128xf32> to vector<1x8x128xf32>
    tpu.vector_store %arg10[%c0_77, %c0_78, %c0_79], %112 {strides = array<i32>} : memref<2x8x128xf32, #tpu.memory_space<vmem>>, vector<1x8x128xf32>,
    %113 = arith.truncf %109 : vector<8x128xf32> to vector<8x128xbf16>
    %c1_80 = arith.constant 1 : index
    %c0_81 = arith.constant 0 : index
    %c0_82 = arith.constant 0 : index
    %114 = vector.load %arg10[%c1_80, %c0_81, %c0_82] : memref<2x8x128xf32, #tpu.memory_space<vmem>>, vector<1x8x128xf32>
    %115 = vector.shape_cast %114 : vector<1x8x128xf32> to vector<8x128xf32>
    %cst_83 = arith.constant dense<0.000000e+00> : vector<8x128xf32>
    %116 = tpu.matmul %113, %5, %cst_83 {dimension_numbers = #tpu.dot_dimension_numbers<[1], [0], [0], [1], [0, 0, 1, 1], [], []>} : vector<8x128xbf16>, vector<128x128xbf16>, vector<8x128xf32> -> vector<8x128xf32>
    %117 = arith.truncf %115 : vector<8x128xf32> to vector<8x128xbf16>
    %cst_84 = arith.constant dense<0.000000e+00> : vector<8x128xf32>
    %118 = tpu.matmul %117, %9, %cst_84 {dimension_numbers = #tpu.dot_dimension_numbers<[1], [0], [0], [1], [0, 0, 1, 1], [], []>} : vector<8x128xbf16>, vector<128x128xbf16>, vector<8x128xf32> -> vector<8x128xf32>
    %119 = arith.addf %116, %118 : vector<8x128xf32>
    %120 = vector.broadcast %13 : vector<1x128xf32> to vector<8x128xf32>
    %121 = arith.addf %119, %120 : vector<8x128xf32>
    %122 = math.tanh %121 : vector<8x128xf32>
    %c1_85 = arith.constant 1 : index
    %c0_86 = arith.constant 0 : index
    %c0_87 = arith.constant 0 : index
    %123 = vector.load %arg10[%c1_85, %c0_86, %c0_87] : memref<2x8x128xf32, #tpu.memory_space<vmem>>, vector<1x8x128xf32>
    %124 = vector.shape_cast %123 : vector<1x8x128xf32> to vector<8x128xf32>
    %125 = vector.shape_cast %122 : vector<8x128xf32> to vector<1x8x128xf32>
    tpu.vector_store %arg10[%c1_85, %c0_86, %c0_87], %125 {strides = array<i32>} : memref<2x8x128xf32, #tpu.memory_space<vmem>>, vector<1x8x128xf32>,
    %c4_i32 = arith.constant 4 : i32
    %126 = arith.index_cast %c4_i32 : i32 to index
    %c0_88 = arith.constant 0 : index
    %c0_89 = arith.constant 0 : index
    %127 = vector.load %arg2[%126, %c0_88, %c0_89] : memref<8x8x128xbf16, #tpu.memory_space<vmem>>, vector<1x8x128xbf16>
    %128 = vector.shape_cast %127 : vector<1x8x128xbf16> to vector<8x128xbf16>
    %c0_90 = arith.constant 0 : index
    %c0_91 = arith.constant 0 : index
    %c0_92 = arith.constant 0 : index
    %129 = vector.load %arg10[%c0_90, %c0_91, %c0_92] : memref<2x8x128xf32, #tpu.memory_space<vmem>>, vector<1x8x128xf32>
    %130 = vector.shape_cast %129 : vector<1x8x128xf32> to vector<8x128xf32>
    %cst_93 = arith.constant dense<0.000000e+00> : vector<8x128xf32>
    %131 = tpu.matmul %128, %3, %cst_93 {dimension_numbers = #tpu.dot_dimension_numbers<[1], [0], [0], [1], [0, 0, 1, 1], [], []>} : vector<8x128xbf16>, vector<128x128xbf16>, vector<8x128xf32> -> vector<8x128xf32>
    %132 = arith.truncf %130 : vector<8x128xf32> to vector<8x128xbf16>
    %cst_94 = arith.constant dense<0.000000e+00> : vector<8x128xf32>
    %133 = tpu.matmul %132, %7, %cst_94 {dimension_numbers = #tpu.dot_dimension_numbers<[1], [0], [0], [1], [0, 0, 1, 1], [], []>} : vector<8x128xbf16>, vector<128x128xbf16>, vector<8x128xf32> -> vector<8x128xf32>
    %134 = arith.addf %131, %133 : vector<8x128xf32>
    %135 = vector.broadcast %11 : vector<1x128xf32> to vector<8x128xf32>
    %136 = arith.addf %134, %135 : vector<8x128xf32>
    %137 = math.tanh %136 : vector<8x128xf32>
    %c0_95 = arith.constant 0 : index
    %c0_96 = arith.constant 0 : index
    %c0_97 = arith.constant 0 : index
    %138 = vector.load %arg10[%c0_95, %c0_96, %c0_97] : memref<2x8x128xf32, #tpu.memory_space<vmem>>, vector<1x8x128xf32>
    %139 = vector.shape_cast %138 : vector<1x8x128xf32> to vector<8x128xf32>
    %140 = vector.shape_cast %137 : vector<8x128xf32> to vector<1x8x128xf32>
    tpu.vector_store %arg10[%c0_95, %c0_96, %c0_97], %140 {strides = array<i32>} : memref<2x8x128xf32, #tpu.memory_space<vmem>>, vector<1x8x128xf32>,
    %141 = arith.truncf %137 : vector<8x128xf32> to vector<8x128xbf16>
    %c1_98 = arith.constant 1 : index
    %c0_99 = arith.constant 0 : index
    %c0_100 = arith.constant 0 : index
    %142 = vector.load %arg10[%c1_98, %c0_99, %c0_100] : memref<2x8x128xf32, #tpu.memory_space<vmem>>, vector<1x8x128xf32>
    %143 = vector.shape_cast %142 : vector<1x8x128xf32> to vector<8x128xf32>
    %cst_101 = arith.constant dense<0.000000e+00> : vector<8x128xf32>
    %144 = tpu.matmul %141, %5, %cst_101 {dimension_numbers = #tpu.dot_dimension_numbers<[1], [0], [0], [1], [0, 0, 1, 1], [], []>} : vector<8x128xbf16>, vector<128x128xbf16>, vector<8x128xf32> -> vector<8x128xf32>
    %145 = arith.truncf %143 : vector<8x128xf32> to vector<8x128xbf16>
    %cst_102 = arith.constant dense<0.000000e+00> : vector<8x128xf32>
    %146 = tpu.matmul %145, %9, %cst_102 {dimension_numbers = #tpu.dot_dimension_numbers<[1], [0], [0], [1], [0, 0, 1, 1], [], []>} : vector<8x128xbf16>, vector<128x128xbf16>, vector<8x128xf32> -> vector<8x128xf32>
    %147 = arith.addf %144, %146 : vector<8x128xf32>
    %148 = vector.broadcast %13 : vector<1x128xf32> to vector<8x128xf32>
    %149 = arith.addf %147, %148 : vector<8x128xf32>
    %150 = math.tanh %149 : vector<8x128xf32>
    %c1_103 = arith.constant 1 : index
    %c0_104 = arith.constant 0 : index
    %c0_105 = arith.constant 0 : index
    %151 = vector.load %arg10[%c1_103, %c0_104, %c0_105] : memref<2x8x128xf32, #tpu.memory_space<vmem>>, vector<1x8x128xf32>
    %152 = vector.shape_cast %151 : vector<1x8x128xf32> to vector<8x128xf32>
    %153 = vector.shape_cast %150 : vector<8x128xf32> to vector<1x8x128xf32>
    tpu.vector_store %arg10[%c1_103, %c0_104, %c0_105], %153 {strides = array<i32>} : memref<2x8x128xf32, #tpu.memory_space<vmem>>, vector<1x8x128xf32>,
    %c5_i32 = arith.constant 5 : i32
    %154 = arith.index_cast %c5_i32 : i32 to index
    %c0_106 = arith.constant 0 : index
    %c0_107 = arith.constant 0 : index
    %155 = vector.load %arg2[%154, %c0_106, %c0_107] : memref<8x8x128xbf16, #tpu.memory_space<vmem>>, vector<1x8x128xbf16>
    %156 = vector.shape_cast %155 : vector<1x8x128xbf16> to vector<8x128xbf16>
    %c0_108 = arith.constant 0 : index
    %c0_109 = arith.constant 0 : index
    %c0_110 = arith.constant 0 : index
    %157 = vector.load %arg10[%c0_108, %c0_109, %c0_110] : memref<2x8x128xf32, #tpu.memory_space<vmem>>, vector<1x8x128xf32>
    %158 = vector.shape_cast %157 : vector<1x8x128xf32> to vector<8x128xf32>
    %cst_111 = arith.constant dense<0.000000e+00> : vector<8x128xf32>
    %159 = tpu.matmul %156, %3, %cst_111 {dimension_numbers = #tpu.dot_dimension_numbers<[1], [0], [0], [1], [0, 0, 1, 1], [], []>} : vector<8x128xbf16>, vector<128x128xbf16>, vector<8x128xf32> -> vector<8x128xf32>
    %160 = arith.truncf %158 : vector<8x128xf32> to vector<8x128xbf16>
    %cst_112 = arith.constant dense<0.000000e+00> : vector<8x128xf32>
    %161 = tpu.matmul %160, %7, %cst_112 {dimension_numbers = #tpu.dot_dimension_numbers<[1], [0], [0], [1], [0, 0, 1, 1], [], []>} : vector<8x128xbf16>, vector<128x128xbf16>, vector<8x128xf32> -> vector<8x128xf32>
    %162 = arith.addf %159, %161 : vector<8x128xf32>
    %163 = vector.broadcast %11 : vector<1x128xf32> to vector<8x128xf32>
    %164 = arith.addf %162, %163 : vector<8x128xf32>
    %165 = math.tanh %164 : vector<8x128xf32>
    %c0_113 = arith.constant 0 : index
    %c0_114 = arith.constant 0 : index
    %c0_115 = arith.constant 0 : index
    %166 = vector.load %arg10[%c0_113, %c0_114, %c0_115] : memref<2x8x128xf32, #tpu.memory_space<vmem>>, vector<1x8x128xf32>
    %167 = vector.shape_cast %166 : vector<1x8x128xf32> to vector<8x128xf32>
    %168 = vector.shape_cast %165 : vector<8x128xf32> to vector<1x8x128xf32>
    tpu.vector_store %arg10[%c0_113, %c0_114, %c0_115], %168 {strides = array<i32>} : memref<2x8x128xf32, #tpu.memory_space<vmem>>, vector<1x8x128xf32>,
    %169 = arith.truncf %165 : vector<8x128xf32> to vector<8x128xbf16>
    %c1_116 = arith.constant 1 : index
    %c0_117 = arith.constant 0 : index
    %c0_118 = arith.constant 0 : index
    %170 = vector.load %arg10[%c1_116, %c0_117, %c0_118] : memref<2x8x128xf32, #tpu.memory_space<vmem>>, vector<1x8x128xf32>
    %171 = vector.shape_cast %170 : vector<1x8x128xf32> to vector<8x128xf32>
    %cst_119 = arith.constant dense<0.000000e+00> : vector<8x128xf32>
    %172 = tpu.matmul %169, %5, %cst_119 {dimension_numbers = #tpu.dot_dimension_numbers<[1], [0], [0], [1], [0, 0, 1, 1], [], []>} : vector<8x128xbf16>, vector<128x128xbf16>, vector<8x128xf32> -> vector<8x128xf32>
    %173 = arith.truncf %171 : vector<8x128xf32> to vector<8x128xbf16>
    %cst_120 = arith.constant dense<0.000000e+00> : vector<8x128xf32>
    %174 = tpu.matmul %173, %9, %cst_120 {dimension_numbers = #tpu.dot_dimension_numbers<[1], [0], [0], [1], [0, 0, 1, 1], [], []>} : vector<8x128xbf16>, vector<128x128xbf16>, vector<8x128xf32> -> vector<8x128xf32>
    %175 = arith.addf %172, %174 : vector<8x128xf32>
    %176 = vector.broadcast %13 : vector<1x128xf32> to vector<8x128xf32>
    %177 = arith.addf %175, %176 : vector<8x128xf32>
    %178 = math.tanh %177 : vector<8x128xf32>
    %c1_121 = arith.constant 1 : index
    %c0_122 = arith.constant 0 : index
    %c0_123 = arith.constant 0 : index
    %179 = vector.load %arg10[%c1_121, %c0_122, %c0_123] : memref<2x8x128xf32, #tpu.memory_space<vmem>>, vector<1x8x128xf32>
    %180 = vector.shape_cast %179 : vector<1x8x128xf32> to vector<8x128xf32>
    %181 = vector.shape_cast %178 : vector<8x128xf32> to vector<1x8x128xf32>
    tpu.vector_store %arg10[%c1_121, %c0_122, %c0_123], %181 {strides = array<i32>} : memref<2x8x128xf32, #tpu.memory_space<vmem>>, vector<1x8x128xf32>,
    %c6_i32 = arith.constant 6 : i32
    %182 = arith.index_cast %c6_i32 : i32 to index
    %c0_124 = arith.constant 0 : index
    %c0_125 = arith.constant 0 : index
    %183 = vector.load %arg2[%182, %c0_124, %c0_125] : memref<8x8x128xbf16, #tpu.memory_space<vmem>>, vector<1x8x128xbf16>
    %184 = vector.shape_cast %183 : vector<1x8x128xbf16> to vector<8x128xbf16>
    %c0_126 = arith.constant 0 : index
    %c0_127 = arith.constant 0 : index
    %c0_128 = arith.constant 0 : index
    %185 = vector.load %arg10[%c0_126, %c0_127, %c0_128] : memref<2x8x128xf32, #tpu.memory_space<vmem>>, vector<1x8x128xf32>
    %186 = vector.shape_cast %185 : vector<1x8x128xf32> to vector<8x128xf32>
    %cst_129 = arith.constant dense<0.000000e+00> : vector<8x128xf32>
    %187 = tpu.matmul %184, %3, %cst_129 {dimension_numbers = #tpu.dot_dimension_numbers<[1], [0], [0], [1], [0, 0, 1, 1], [], []>} : vector<8x128xbf16>, vector<128x128xbf16>, vector<8x128xf32> -> vector<8x128xf32>
    %188 = arith.truncf %186 : vector<8x128xf32> to vector<8x128xbf16>
    %cst_130 = arith.constant dense<0.000000e+00> : vector<8x128xf32>
    %189 = tpu.matmul %188, %7, %cst_130 {dimension_numbers = #tpu.dot_dimension_numbers<[1], [0], [0], [1], [0, 0, 1, 1], [], []>} : vector<8x128xbf16>, vector<128x128xbf16>, vector<8x128xf32> -> vector<8x128xf32>
    %190 = arith.addf %187, %189 : vector<8x128xf32>
    %191 = vector.broadcast %11 : vector<1x128xf32> to vector<8x128xf32>
    %192 = arith.addf %190, %191 : vector<8x128xf32>
    %193 = math.tanh %192 : vector<8x128xf32>
    %c0_131 = arith.constant 0 : index
    %c0_132 = arith.constant 0 : index
    %c0_133 = arith.constant 0 : index
    %194 = vector.load %arg10[%c0_131, %c0_132, %c0_133] : memref<2x8x128xf32, #tpu.memory_space<vmem>>, vector<1x8x128xf32>
    %195 = vector.shape_cast %194 : vector<1x8x128xf32> to vector<8x128xf32>
    %196 = vector.shape_cast %193 : vector<8x128xf32> to vector<1x8x128xf32>
    tpu.vector_store %arg10[%c0_131, %c0_132, %c0_133], %196 {strides = array<i32>} : memref<2x8x128xf32, #tpu.memory_space<vmem>>, vector<1x8x128xf32>,
    %197 = arith.truncf %193 : vector<8x128xf32> to vector<8x128xbf16>
    %c1_134 = arith.constant 1 : index
    %c0_135 = arith.constant 0 : index
    %c0_136 = arith.constant 0 : index
    %198 = vector.load %arg10[%c1_134, %c0_135, %c0_136] : memref<2x8x128xf32, #tpu.memory_space<vmem>>, vector<1x8x128xf32>
    %199 = vector.shape_cast %198 : vector<1x8x128xf32> to vector<8x128xf32>
    %cst_137 = arith.constant dense<0.000000e+00> : vector<8x128xf32>
    %200 = tpu.matmul %197, %5, %cst_137 {dimension_numbers = #tpu.dot_dimension_numbers<[1], [0], [0], [1], [0, 0, 1, 1], [], []>} : vector<8x128xbf16>, vector<128x128xbf16>, vector<8x128xf32> -> vector<8x128xf32>
    %201 = arith.truncf %199 : vector<8x128xf32> to vector<8x128xbf16>
    %cst_138 = arith.constant dense<0.000000e+00> : vector<8x128xf32>
    %202 = tpu.matmul %201, %9, %cst_138 {dimension_numbers = #tpu.dot_dimension_numbers<[1], [0], [0], [1], [0, 0, 1, 1], [], []>} : vector<8x128xbf16>, vector<128x128xbf16>, vector<8x128xf32> -> vector<8x128xf32>
    %203 = arith.addf %200, %202 : vector<8x128xf32>
    %204 = vector.broadcast %13 : vector<1x128xf32> to vector<8x128xf32>
    %205 = arith.addf %203, %204 : vector<8x128xf32>
    %206 = math.tanh %205 : vector<8x128xf32>
    %c1_139 = arith.constant 1 : index
    %c0_140 = arith.constant 0 : index
    %c0_141 = arith.constant 0 : index
    %207 = vector.load %arg10[%c1_139, %c0_140, %c0_141] : memref<2x8x128xf32, #tpu.memory_space<vmem>>, vector<1x8x128xf32>
    %208 = vector.shape_cast %207 : vector<1x8x128xf32> to vector<8x128xf32>
    %209 = vector.shape_cast %206 : vector<8x128xf32> to vector<1x8x128xf32>
    tpu.vector_store %arg10[%c1_139, %c0_140, %c0_141], %209 {strides = array<i32>} : memref<2x8x128xf32, #tpu.memory_space<vmem>>, vector<1x8x128xf32>,
    %c7_i32 = arith.constant 7 : i32
    %210 = arith.index_cast %c7_i32 : i32 to index
    %c0_142 = arith.constant 0 : index
    %c0_143 = arith.constant 0 : index
    %211 = vector.load %arg2[%210, %c0_142, %c0_143] : memref<8x8x128xbf16, #tpu.memory_space<vmem>>, vector<1x8x128xbf16>
    %212 = vector.shape_cast %211 : vector<1x8x128xbf16> to vector<8x128xbf16>
    %c0_144 = arith.constant 0 : index
    %c0_145 = arith.constant 0 : index
    %c0_146 = arith.constant 0 : index
    %213 = vector.load %arg10[%c0_144, %c0_145, %c0_146] : memref<2x8x128xf32, #tpu.memory_space<vmem>>, vector<1x8x128xf32>
    %214 = vector.shape_cast %213 : vector<1x8x128xf32> to vector<8x128xf32>
    %cst_147 = arith.constant dense<0.000000e+00> : vector<8x128xf32>
    %215 = tpu.matmul %212, %3, %cst_147 {dimension_numbers = #tpu.dot_dimension_numbers<[1], [0], [0], [1], [0, 0, 1, 1], [], []>} : vector<8x128xbf16>, vector<128x128xbf16>, vector<8x128xf32> -> vector<8x128xf32>
    %216 = arith.truncf %214 : vector<8x128xf32> to vector<8x128xbf16>
    %cst_148 = arith.constant dense<0.000000e+00> : vector<8x128xf32>
    %217 = tpu.matmul %216, %7, %cst_148 {dimension_numbers = #tpu.dot_dimension_numbers<[1], [0], [0], [1], [0, 0, 1, 1], [], []>} : vector<8x128xbf16>, vector<128x128xbf16>, vector<8x128xf32> -> vector<8x128xf32>
    %218 = arith.addf %215, %217 : vector<8x128xf32>
    %219 = vector.broadcast %11 : vector<1x128xf32> to vector<8x128xf32>
    %220 = arith.addf %218, %219 : vector<8x128xf32>
    %221 = math.tanh %220 : vector<8x128xf32>
    %c0_149 = arith.constant 0 : index
    %c0_150 = arith.constant 0 : index
    %c0_151 = arith.constant 0 : index
    %222 = vector.load %arg10[%c0_149, %c0_150, %c0_151] : memref<2x8x128xf32, #tpu.memory_space<vmem>>, vector<1x8x128xf32>
    %223 = vector.shape_cast %222 : vector<1x8x128xf32> to vector<8x128xf32>
    %224 = vector.shape_cast %221 : vector<8x128xf32> to vector<1x8x128xf32>
    tpu.vector_store %arg10[%c0_149, %c0_150, %c0_151], %224 {strides = array<i32>} : memref<2x8x128xf32, #tpu.memory_space<vmem>>, vector<1x8x128xf32>,
    %225 = arith.truncf %221 : vector<8x128xf32> to vector<8x128xbf16>
    %c1_152 = arith.constant 1 : index
    %c0_153 = arith.constant 0 : index
    %c0_154 = arith.constant 0 : index
    %226 = vector.load %arg10[%c1_152, %c0_153, %c0_154] : memref<2x8x128xf32, #tpu.memory_space<vmem>>, vector<1x8x128xf32>
    %227 = vector.shape_cast %226 : vector<1x8x128xf32> to vector<8x128xf32>
    %cst_155 = arith.constant dense<0.000000e+00> : vector<8x128xf32>
    %228 = tpu.matmul %225, %5, %cst_155 {dimension_numbers = #tpu.dot_dimension_numbers<[1], [0], [0], [1], [0, 0, 1, 1], [], []>} : vector<8x128xbf16>, vector<128x128xbf16>, vector<8x128xf32> -> vector<8x128xf32>
    %229 = arith.truncf %227 : vector<8x128xf32> to vector<8x128xbf16>
    %cst_156 = arith.constant dense<0.000000e+00> : vector<8x128xf32>
    %230 = tpu.matmul %229, %9, %cst_156 {dimension_numbers = #tpu.dot_dimension_numbers<[1], [0], [0], [1], [0, 0, 1, 1], [], []>} : vector<8x128xbf16>, vector<128x128xbf16>, vector<8x128xf32> -> vector<8x128xf32>
    %231 = arith.addf %228, %230 : vector<8x128xf32>
    %232 = vector.broadcast %13 : vector<1x128xf32> to vector<8x128xf32>
    %233 = arith.addf %231, %232 : vector<8x128xf32>
    %234 = math.tanh %233 : vector<8x128xf32>
    %c1_157 = arith.constant 1 : index
    %c0_158 = arith.constant 0 : index
    %c0_159 = arith.constant 0 : index
    %235 = vector.load %arg10[%c1_157, %c0_158, %c0_159] : memref<2x8x128xf32, #tpu.memory_space<vmem>>, vector<1x8x128xf32>
    %236 = vector.shape_cast %235 : vector<1x8x128xf32> to vector<8x128xf32>
    %237 = vector.shape_cast %234 : vector<8x128xf32> to vector<1x8x128xf32>
    tpu.vector_store %arg10[%c1_157, %c0_158, %c0_159], %237 {strides = array<i32>} : memref<2x8x128xf32, #tpu.memory_space<vmem>>, vector<1x8x128xf32>,
    %c8_i32 = arith.constant 8 : i32
    %c0_i32_160 = arith.constant 0 : i32
    %238 = arith.cmpi eq, %arg1, %c0_i32_160 : i32
    %239 = arith.extui %238 : i1 to i32
    %c0_i32_161 = arith.constant 0 : i32
    %240 = arith.cmpi ne, %239, %c0_i32_161 : i32
    scf.if %240 {
      %c1_162 = arith.constant 1 : index
      %c0_163 = arith.constant 0 : index
      %c0_164 = arith.constant 0 : index
      %241 = vector.load %arg10[%c1_162, %c0_163, %c0_164] : memref<2x8x128xf32, #tpu.memory_space<vmem>>, vector<1x8x128xf32>
      %242 = vector.shape_cast %241 : vector<1x8x128xf32> to vector<8x128xf32>
      %243 = arith.truncf %242 : vector<8x128xf32> to vector<8x128xbf16>
      %c0_165 = arith.constant 0 : index
      %c0_166 = arith.constant 0 : index
      %244 = vector.load %arg7[%c0_165, %c0_166] : memref<128x128xbf16, #tpu.memory_space<vmem>>, vector<128x128xbf16>
      %cst_167 = arith.constant dense<0.000000e+00> : vector<8x128xf32>
      %245 = tpu.matmul %243, %244, %cst_167 {dimension_numbers = #tpu.dot_dimension_numbers<[1], [0], [0], [1], [0, 0, 1, 1], [], []>} : vector<8x128xbf16>, vector<128x128xbf16>, vector<8x128xf32> -> vector<8x128xf32>
      %c0_168 = arith.constant 0 : index
      %c0_169 = arith.constant 0 : index
      %246 = vector.load %arg8[%c0_168, %c0_169] : memref<1x128xf32, #tpu.memory_space<vmem>>, vector<1x128xf32>
      %247 = vector.broadcast %246 : vector<1x128xf32> to vector<8x128xf32>
      %248 = arith.addf %245, %247 : vector<8x128xf32>
      %c0_170 = arith.constant 0 : index
      %c0_171 = arith.constant 0 : index
      %249 = vector.load %arg9[%c0_170, %c0_171] : memref<8x128xf32, #tpu.memory_space<vmem>>, vector<8x128xf32>
      tpu.vector_store %arg9[%c0_170, %c0_171], %248 {strides = array<i32>} : memref<8x128xf32, #tpu.memory_space<vmem>>, vector<8x128xf32>,
    } else {
    }
    return
  }
  func.func @transform_0(%arg0: i32, %arg1: i32) -> (i32, i32, i32) {
    %c0_i32 = arith.constant 0 : i32
    %c0_i32_0 = arith.constant 0 : i32
    return %arg1, %arg0, %c0_i32 : i32, i32, i32
  }
  func.func @transform_1(%arg0: i32, %arg1: i32) -> (i32, i32) {
    %c0_i32 = arith.constant 0 : i32
    %c0_i32_0 = arith.constant 0 : i32
    %c0_i32_1 = arith.constant 0 : i32
    return %c0_i32, %c0_i32_0 : i32, i32
  }
  func.func @transform_2(%arg0: i32, %arg1: i32) -> (i32, i32, i32) {
    %c0_i32 = arith.constant 0 : i32
    %c0_i32_0 = arith.constant 0 : i32
    %c0_i32_1 = arith.constant 0 : i32
    %c0_i32_2 = arith.constant 0 : i32
    return %c0_i32, %c0_i32_0, %c0_i32_1 : i32, i32, i32
  }
  func.func @transform_3(%arg0: i32, %arg1: i32) -> (i32, i32, i32) {
    %c0_i32 = arith.constant 0 : i32
    %c0_i32_0 = arith.constant 0 : i32
    %c0_i32_1 = arith.constant 0 : i32
    %c0_i32_2 = arith.constant 0 : i32
    return %c0_i32, %c0_i32_0, %c0_i32_1 : i32, i32, i32
  }
  func.func @transform_4(%arg0: i32, %arg1: i32) -> (i32, i32, i32) {
    %c0_i32 = arith.constant 0 : i32
    %c0_i32_0 = arith.constant 0 : i32
    %c0_i32_1 = arith.constant 0 : i32
    %c0_i32_2 = arith.constant 0 : i32
    return %c0_i32, %c0_i32_0, %c0_i32_1 : i32, i32, i32
  }
  func.func @transform_5(%arg0: i32, %arg1: i32) -> (i32, i32) {
    %c0_i32 = arith.constant 0 : i32
    %c0_i32_0 = arith.constant 0 : i32
    %c0_i32_1 = arith.constant 0 : i32
    return %c0_i32, %c0_i32_0 : i32, i32
  }
  func.func @transform_6(%arg0: i32, %arg1: i32) -> (i32, i32) {
    %c0_i32 = arith.constant 0 : i32
    %c0_i32_0 = arith.constant 0 : i32
    %c0_i32_1 = arith.constant 0 : i32
    return %c0_i32, %c0_i32_0 : i32, i32
  }
  func.func @transform_7(%arg0: i32, %arg1: i32) -> (i32, i32) {
    %c0_i32 = arith.constant 0 : i32
    %c0_i32_0 = arith.constant 0 : i32
    return %arg0, %c0_i32 : i32, i32
  }
}

</mosaic_0001>

<llo_original>
// kernel: tpu_custom_call.1
$region0: #{tpu_custom_call.1}
  #allocation0 [shape = 'u32[]', space=smem, size = 0x4, offset = 0x4, fixed_abs, tag = 'smem constant byte address 0x4 - core index']
  #allocation1 [shape = 'u32[144,128]{1,0:T(1,128)}', space=vmem, size = 0x12000, scoped, tag = 'internal scratch']
  #allocation2 [shape = 'f32[2,8,128]{2,1,0:T(8,128)}', space=vmem, size = 0x2000, scoped, tag = 'scratch operand']
  %s0 = inlined_call_operand.hbm [shape: bf16[8,8,128], index: 0, kind: input, shape index: {}]
  %s1 = inlined_call_operand.hbm [shape: bf16[128,128], index: 1, kind: input, shape index: {}]
  %s2 = inlined_call_operand.hbm [shape: bf16[1,128,128], index: 2, kind: input, shape index: {}]
  %s3 = inlined_call_operand.hbm [shape: bf16[2,128,128], index: 3, kind: input, shape index: {}]
  %s4 = inlined_call_operand.vmem [shape: f32[2,1,128], index: 4, kind: input, shape index: {}]
  %s5 = inlined_call_operand.hbm [shape: bf16[128,128], index: 5, kind: input, shape index: {}]
  %s6 = inlined_call_operand.vmem [shape: f32[1,128], index: 6, kind: input, shape index: {}]
  %s7 = inlined_call_operand.hbm [shape: f32[8,128], index: 7, kind: output, shape index: {}]
  %s8 = sld [smem:[#allocation0]]
  $region66: #{tpu_custom_call.1} parent=0
    _
  %s10 = ssub.s32 1, %s8
  %s11 = scalar_select 0, %s10, %s8
  $region1: #{tpu_custom_call.1} parent=0
    #allocation3 [shape = 'u8[16384]{0}', space=vmem, size = 0x4000, scoped, tag = 'input window, operand 0, single buffered']
    #allocation4 [shape = 's32[1]{0}', space=sflag, size = 0x4, scoped, tag = 'scoped memory for tpu_custom_call.1']
    #allocation5 [shape = 's32[1]{0}', space=sflag, size = 0x4, scoped, tag = 'scoped memory for tpu_custom_call.1']
    #allocation6 [shape = 'u8[32768]{0}', space=vmem, size = 0x8000, scoped, tag = 'input window, operand 1, single buffered']
    #allocation7 [shape = 's32[1]{0}', space=sflag, size = 0x4, scoped, tag = 'scoped memory for tpu_custom_call.1']
    #allocation8 [shape = 'u8[32768]{0}', space=vmem, size = 0x8000, scoped, tag = 'input window, operand 2, single buffered']
    #allocation9 [shape = 'u8[65536]{0}', space=vmem, size = 0x10000, scoped, tag = 'input window, operand 3, single buffered']
    #allocation10 [shape = 's32[1]{0}', space=sflag, size = 0x4, scoped, tag = 'scoped memory for tpu_custom_call.1']
    #allocation11 [shape = 'u8[32768]{0}', space=vmem, size = 0x8000, scoped, tag = 'input window, operand 5, single buffered']
    #allocation12 [shape = 'u8[4096]{0}', space=vmem, size = 0x1000, scoped, tag = 'output window, operand 0, single buffered']
    %12 = vsyncpa [#allocation4], 0
    %13 = vsyncpa [#allocation7], 0
    %14 = vsyncpa [#allocation10], 0
    %15 = vsyncpa [#allocation5], 0
    // Predicated region
    $region2: #{tpu_custom_call.1} parent=1 // pred_check
      _
    $region3: #{tpu_custom_call.1} parent=1 // pred_check_branch
      %17 = sbr.rel (0) target = $region5
    $region4: #{tpu_custom_call.1} parent=1 // pred_region
      %s19 = ssub.s32 512, 512
      %20 = vsyncadd [#allocation4], %s19
      %s21 = sshll.u32 [#allocation3], 4
      %s22 = int_to_ptr.vmem [resolvable:$true] %s21
      %27 = dma.hbm_to_vmem [thread:$0]  %s0, 512, %s22, [#allocation4], 64, 64, 4
    $region5: #{tpu_custom_call.1} parent=1 // pred_fallthru
      _
    // Predicated region
    $region6: #{tpu_custom_call.1} parent=1 // pred_check
      _
    $region7: #{tpu_custom_call.1} parent=1 // pred_check_branch
      %29 = sbr.rel (0) target = $region9
    $region8: #{tpu_custom_call.1} parent=1 // pred_region
      %s31 = ssub.s32 1024, 1024
      %32 = vsyncadd [#allocation7], %s31
      %s33 = sshll.u32 [#allocation6], 4
      %s34 = int_to_ptr.vmem [resolvable:$true] %s33
      %39 = dma.hbm_to_vmem [thread:$0]  %s1, 1024, %s34, [#allocation7], 64, 64, 4
    $region9: #{tpu_custom_call.1} parent=1 // pred_fallthru
      _
    // Predicated region
    $region10: #{tpu_custom_call.1} parent=1 // pred_check
      _
    $region11: #{tpu_custom_call.1} parent=1 // pred_check_branch
      %41 = sbr.rel (0) target = $region13
    $region12: #{tpu_custom_call.1} parent=1 // pred_region
      %s43 = ssub.s32 1024, 1024
      %44 = vsyncadd [#allocation7], %s43
      %s45 = sshll.u32 [#allocation8], 4
      %s46 = int_to_ptr.vmem [resolvable:$true] %s45
      %51 = dma.hbm_to_vmem [thread:$0]  %s2, 1024, %s46, [#allocation7], 64, 64, 4
    $region13: #{tpu_custom_call.1} parent=1 // pred_fallthru
      _
    // Predicated region
    $region14: #{tpu_custom_call.1} parent=1 // pred_check
      _
    $region15: #{tpu_custom_call.1} parent=1 // pred_check_branch
      %53 = sbr.rel (0) target = $region17
    $region16: #{tpu_custom_call.1} parent=1 // pred_region
      %s55 = ssub.s32 2048, 2048
      %56 = vsyncadd [#allocation10], %s55
      %s57 = sshll.u32 [#allocation9], 4
      %s58 = int_to_ptr.vmem [resolvable:$true] %s57
      %63 = dma.hbm_to_vmem [thread:$0]  %s3, 2048, %s58, [#allocation10], 64, 64, 4
    $region17: #{tpu_custom_call.1} parent=1 // pred_fallthru
      _
    // Predicated region
    $region18: #{tpu_custom_call.1} parent=1 // pred_check
      _
    $region19: #{tpu_custom_call.1} parent=1 // pred_check_branch
      %65 = sbr.rel (0) target = $region21
    $region20: #{tpu_custom_call.1} parent=1 // pred_region
      _
    $region21: #{tpu_custom_call.1} parent=1 // pred_fallthru
      _
    // Predicated region
    $region22: #{tpu_custom_call.1} parent=1 // pred_check
      _
    $region23: #{tpu_custom_call.1} parent=1 // pred_check_branch
      %67 = sbr.rel (0) target = $region25
    $region24: #{tpu_custom_call.1} parent=1 // pred_region
      %s69 = ssub.s32 1024, 1024
      %70 = vsyncadd [#allocation10], %s69
      %s71 = sshll.u32 [#allocation11], 4
      %s72 = int_to_ptr.vmem [resolvable:$true] %s71
      %77 = dma.hbm_to_vmem [thread:$0]  %s5, 1024, %s72, [#allocation10], 64, 64, 4
    $region25: #{tpu_custom_call.1} parent=1 // pred_fallthru
      _
    // Predicated region
    $region26: #{tpu_custom_call.1} parent=1 // pred_check
      _
    $region27: #{tpu_custom_call.1} parent=1 // pred_check_branch
      %79 = sbr.rel (0) target = $region29
    $region28: #{tpu_custom_call.1} parent=1 // pred_region
      _
    $region29: #{tpu_custom_call.1} parent=1 // pred_fallthru
      _
    // Predicated region
    $region30: #{tpu_custom_call.1} parent=1 // pred_check
      _
    $region31: #{tpu_custom_call.1} parent=1 // pred_check_branch
      %81 = sbr.rel (0) target = $region33
    $region32: #{tpu_custom_call.1} parent=1 // pred_region
      %82 = dma.done [#allocation4], 512
    $region33: #{tpu_custom_call.1} parent=1 // pred_fallthru
      _
    // Predicated region
    $region34: #{tpu_custom_call.1} parent=1 // pred_check
      _
    $region35: #{tpu_custom_call.1} parent=1 // pred_check_branch
      %84 = sbr.rel (0) target = $region37
    $region36: #{tpu_custom_call.1} parent=1 // pred_region
      %85 = dma.done [#allocation7], 1024
    $region37: #{tpu_custom_call.1} parent=1 // pred_fallthru
      _
    // Predicated region
    $region38: #{tpu_custom_call.1} parent=1 // pred_check
      _
    $region39: #{tpu_custom_call.1} parent=1 // pred_check_branch
      %87 = sbr.rel (0) target = $region41
    $region40: #{tpu_custom_call.1} parent=1 // pred_region
      %88 = dma.done [#allocation7], 1024
    $region41: #{tpu_custom_call.1} parent=1 // pred_fallthru
      _
    // Predicated region
    $region42: #{tpu_custom_call.1} parent=1 // pred_check
      _
    $region43: #{tpu_custom_call.1} parent=1 // pred_check_branch
      %90 = sbr.rel (0) target = $region45
    $region44: #{tpu_custom_call.1} parent=1 // pred_region
      %91 = dma.done [#allocation10], 2048
    $region45: #{tpu_custom_call.1} parent=1 // pred_fallthru
      _
    // Predicated region
    $region46: #{tpu_custom_call.1} parent=1 // pred_check
      _
    $region47: #{tpu_custom_call.1} parent=1 // pred_check_branch
      %93 = sbr.rel (0) target = $region49
    $region48: #{tpu_custom_call.1} parent=1 // pred_region
      %94 = dma.done [#allocation10], 1024
    $region49: #{tpu_custom_call.1} parent=1 // pred_fallthru
      _
    %p96 = scmp.eq.s32.totalorder 0, 0
    // Predicated region
    $region50: #{tpu_custom_call.1} parent=1 // pred_check
      %p97 = pneg %p96
    $region51: #{tpu_custom_call.1} parent=1 // pred_check_branch
      %99 = sbr.rel (%p97) target = $region53
    $region52: #{tpu_custom_call.1} parent=1 // pred_region
      %100 = vst [vmem:[#allocation2] sm:$0xff] 0.0
      %101 = vst [vmem:[#allocation2 + $0x8] sm:$0xff] 0.0
    $region53: #{tpu_custom_call.1} parent=1 // pred_fallthru
      _
    %v102 = vld [vmem:[#allocation6] sm:$0xf]
    %v103 = vld [vmem:[#allocation6 + $0x4] sm:$0xf]
    %v104 = vld [vmem:[#allocation6 + $0x8] sm:$0xf]
    %v105 = vld [vmem:[#allocation6 + $0xc] sm:$0xf]
    %v106 = vld [vmem:[#allocation6 + $0x10] sm:$0xf]
    %v107 = vld [vmem:[#allocation6 + $0x14] sm:$0xf]
    %v108 = vld [vmem:[#allocation6 + $0x18] sm:$0xf]
    %v109 = vld [vmem:[#allocation6 + $0x1c] sm:$0xf]
    %v110 = vld [vmem:[#allocation6 + $0x20] sm:$0xf]
    %v111 = vld [vmem:[#allocation6 + $0x24] sm:$0xf]
    %v112 = vld [vmem:[#allocation6 + $0x28] sm:$0xf]
    %v113 = vld [vmem:[#allocation6 + $0x2c] sm:$0xf]
    %v114 = vld [vmem:[#allocation6 + $0x30] sm:$0xf]
    %v115 = vld [vmem:[#allocation6 + $0x34] sm:$0xf]
    %v116 = vld [vmem:[#allocation6 + $0x38] sm:$0xf]
    %v117 = vld [vmem:[#allocation6 + $0x3c] sm:$0xf]
    %v118 = vld [vmem:[#allocation8] sm:$0xf]
    %v119 = vld [vmem:[#allocation8 + $0x4] sm:$0xf]
    %v120 = vld [vmem:[#allocation8 + $0x8] sm:$0xf]
    %v121 = vld [vmem:[#allocation8 + $0xc] sm:$0xf]
    %v122 = vld [vmem:[#allocation8 + $0x10] sm:$0xf]
    %v123 = vld [vmem:[#allocation8 + $0x14] sm:$0xf]
    %v124 = vld [vmem:[#allocation8 + $0x18] sm:$0xf]
    %v125 = vld [vmem:[#allocation8 + $0x1c] sm:$0xf]
    %v126 = vld [vmem:[#allocation8 + $0x20] sm:$0xf]
    %v127 = vld [vmem:[#allocation8 + $0x24] sm:$0xf]
    %v128 = vld [vmem:[#allocation8 + $0x28] sm:$0xf]
    %v129 = vld [vmem:[#allocation8 + $0x2c] sm:$0xf]
    %v130 = vld [vmem:[#allocation8 + $0x30] sm:$0xf]
    %v131 = vld [vmem:[#allocation8 + $0x34] sm:$0xf]
    %v132 = vld [vmem:[#allocation8 + $0x38] sm:$0xf]
    %v133 = vld [vmem:[#allocation8 + $0x3c] sm:$0xf]
    %v134 = vld [vmem:[#allocation9] sm:$0xf]
    %v135 = vld [vmem:[#allocation9 + $0x4] sm:$0xf]
    %v136 = vld [vmem:[#allocation9 + $0x8] sm:$0xf]
    %v137 = vld [vmem:[#allocation9 + $0xc] sm:$0xf]
    %v138 = vld [vmem:[#allocation9 + $0x10] sm:$0xf]
    %v139 = vld [vmem:[#allocation9 + $0x14] sm:$0xf]
    %v140 = vld [vmem:[#allocation9 + $0x18] sm:$0xf]
    %v141 = vld [vmem:[#allocation9 + $0x1c] sm:$0xf]
    %v142 = vld [vmem:[#allocation9 + $0x20] sm:$0xf]
    %v143 = vld [vmem:[#allocation9 + $0x24] sm:$0xf]
    %v144 = vld [vmem:[#allocation9 + $0x28] sm:$0xf]
    %v145 = vld [vmem:[#allocation9 + $0x2c] sm:$0xf]
    %v146 = vld [vmem:[#allocation9 + $0x30] sm:$0xf]
    %v147 = vld [vmem:[#allocation9 + $0x34] sm:$0xf]
    %v148 = vld [vmem:[#allocation9 + $0x38] sm:$0xf]
    %v149 = vld [vmem:[#allocation9 + $0x3c] sm:$0xf]
    %s150 = scalar_lea.vmem [#allocation9], 64
    %v151 = vld [vmem:[%s150] sm:$0xf]
    %v152 = vld [vmem:[%s150 + $0x4] sm:$0xf]
    %v153 = vld [vmem:[%s150 + $0x8] sm:$0xf]
    %v154 = vld [vmem:[%s150 + $0xc] sm:$0xf]
    %v155 = vld [vmem:[%s150 + $0x10] sm:$0xf]
    %v156 = vld [vmem:[%s150 + $0x14] sm:$0xf]
    %v157 = vld [vmem:[%s150 + $0x18] sm:$0xf]
    %v158 = vld [vmem:[%s150 + $0x1c] sm:$0xf]
    %v159 = vld [vmem:[%s150 + $0x20] sm:$0xf]
    %v160 = vld [vmem:[%s150 + $0x24] sm:$0xf]
    %v161 = vld [vmem:[%s150 + $0x28] sm:$0xf]
    %v162 = vld [vmem:[%s150 + $0x2c] sm:$0xf]
    %v163 = vld [vmem:[%s150 + $0x30] sm:$0xf]
    %v164 = vld [vmem:[%s150 + $0x34] sm:$0xf]
    %v165 = vld [vmem:[%s150 + $0x38] sm:$0xf]
    %v166 = vld [vmem:[%s150 + $0x3c] sm:$0xf]
    %v167 = vld [vmem:[%s4] sm:$0x1]
    %s168 = scalar_lea.vmem %s4, 1
    %v169 = vld [vmem:[%s168] sm:$0x1]
    %v170 = vld [vmem:[#allocation3] sm:$0xf]
    %v171 = vld [vmem:[#allocation2] sm:$0xff]
    %v172 = vpack.c.bf16 %v171, %v171
    %v189 = vunpack.c.l.b16 %v134
    %v190 = vunpack.c.l.b16 %v135
    %v191 = vunpack.c.l.b16 %v136
    %v192 = vunpack.c.l.b16 %v137
    %v193 = vunpack.c.l.b16 %v138
    %v194 = vunpack.c.l.b16 %v139
    %v195 = vunpack.c.l.b16 %v140
    %v196 = vunpack.c.l.b16 %v141
    %v197 = vunpack.c.l.b16 %v142
    %v198 = vunpack.c.l.b16 %v143
    %v199 = vunpack.c.l.b16 %v144
    %v200 = vunpack.c.l.b16 %v145
    %v201 = vunpack.c.l.b16 %v146
    %v202 = vunpack.c.l.b16 %v147
    %v203 = vunpack.c.l.b16 %v148
    %v204 = vunpack.c.l.b16 %v149
    %v205 = vpack.c.b16 %v190, %v189
    %v206 = vpack.c.b16 %v192, %v191
    %v207 = vpack.c.b16 %v194, %v193
    %v208 = vpack.c.b16 %v196, %v195
    %v209 = vpack.c.b16 %v198, %v197
    %v210 = vpack.c.b16 %v200, %v199
    %v211 = vpack.c.b16 %v202, %v201
    %v212 = vpack.c.b16 %v204, %v203
    %221 = vmatprep.subr.bf16.mxu0 0
    %222 = vmatpush1.bf16.msra.mxu0 %v212
    %223 = vmatprep.subr.bf16.mxu0 0
    %224 = vmatpush1.bf16.msra.mxu0 %v211
    %225 = vmatprep.subr.bf16.mxu0 0
    %226 = vmatpush1.bf16.msra.mxu0 %v210
    %227 = vmatprep.subr.bf16.mxu0 0
    %228 = vmatpush1.bf16.msra.mxu0 %v209
    %229 = vmatprep.subr.bf16.mxu0 0
    %230 = vmatpush1.bf16.msra.mxu0 %v208
    %231 = vmatprep.subr.bf16.mxu0 0
    %232 = vmatpush1.bf16.msra.mxu0 %v207
    %233 = vmatprep.subr.bf16.mxu0 0
    %234 = vmatpush1.bf16.msra.mxu0 %v206
    %235 = vmatprep.subr.bf16.mxu0 0
    %236 = vmatpush1.bf16.msra.mxu0 %v205
    %237 = vmatprep.subr.bf16.mxu0 0
    %238 = vmatpush2.bf16.msra.mxu0 0
    %239 = vmatprep.subr.bf16.mxu0 0
    %240 = vmatpush2.bf16.msra.mxu0 0
    %241 = vmatprep.subr.bf16.mxu0 0
    %242 = vmatpush2.bf16.msra.mxu0 0
    %243 = vmatprep.subr.bf16.mxu0 0
    %244 = vmatpush2.bf16.msra.mxu0 0
    %245 = vmatprep.subr.bf16.mxu0 0
    %246 = vmatpush2.bf16.msra.mxu0 0
    %247 = vmatprep.subr.bf16.mxu0 0
    %248 = vmatpush2.bf16.msra.mxu0 0
    %249 = vmatprep.subr.bf16.mxu0 0
    %250 = vmatpush2.bf16.msra.mxu0 0
    %251 = vmatprep.subr.bf16.mxu0 0
    %252 = vmatpush2.bf16.msra.mxu0 0
    %253 = vmatprep.mubr.bf16.mxu0 0
    %254 = vmatmul.mubr.bf16.gmra.mxu0 %v172
    %v255 = vpop.f32.mrf.mxu0
    %v256 = vadd.f32 0.0, %v255
    %v257 = vpop.f32.mrf.mxu0
    %v258 = vpop.f32.mrf.mxu0
    %v259 = vpop.f32.mrf.mxu0
    %260 = vdwg.mxu0
    %v277 = vunpack.c.l.b16 %v102
    %v278 = vunpack.c.l.b16 %v103
    %v279 = vunpack.c.l.b16 %v104
    %v280 = vunpack.c.l.b16 %v105
    %v281 = vunpack.c.l.b16 %v106
    %v282 = vunpack.c.l.b16 %v107
    %v283 = vunpack.c.l.b16 %v108
    %v284 = vunpack.c.l.b16 %v109
    %v285 = vunpack.c.l.b16 %v110
    %v286 = vunpack.c.l.b16 %v111
    %v287 = vunpack.c.l.b16 %v112
    %v288 = vunpack.c.l.b16 %v113
    %v289 = vunpack.c.l.b16 %v114
    %v290 = vunpack.c.l.b16 %v115
    %v291 = vunpack.c.l.b16 %v116
    %v292 = vunpack.c.l.b16 %v117
    %v293 = vpack.c.b16 %v278, %v277
    %v294 = vpack.c.b16 %v280, %v279
    %v295 = vpack.c.b16 %v282, %v281
    %v296 = vpack.c.b16 %v284, %v283
    %v297 = vpack.c.b16 %v286, %v285
    %v298 = vpack.c.b16 %v288, %v287
    %v299 = vpack.c.b16 %v290, %v289
    %v300 = vpack.c.b16 %v292, %v291
    %309 = vmatprep.subr.bf16.mxu0 0
    %310 = vmatpush1.bf16.msra.mxu0 %v300
    %311 = vmatprep.subr.bf16.mxu0 0
    %312 = vmatpush1.bf16.msra.mxu0 %v299
    %313 = vmatprep.subr.bf16.mxu0 0
    %314 = vmatpush1.bf16.msra.mxu0 %v298
    %315 = vmatprep.subr.bf16.mxu0 0
    %316 = vmatpush1.bf16.msra.mxu0 %v297
    %317 = vmatprep.subr.bf16.mxu0 0
    %318 = vmatpush1.bf16.msra.mxu0 %v296
    %319 = vmatprep.subr.bf16.mxu0 0
    %320 = vmatpush1.bf16.msra.mxu0 %v295
    %321 = vmatprep.subr.bf16.mxu0 0
    %322 = vmatpush1.bf16.msra.mxu0 %v294
    %323 = vmatprep.subr.bf16.mxu0 0
    %324 = vmatpush1.bf16.msra.mxu0 %v293
    %325 = vmatprep.subr.bf16.mxu0 0
    %326 = vmatpush2.bf16.msra.mxu0 0
    %327 = vmatprep.subr.bf16.mxu0 0
    %328 = vmatpush2.bf16.msra.mxu0 0
    %329 = vmatprep.subr.bf16.mxu0 0
    %330 = vmatpush2.bf16.msra.mxu0 0
    %331 = vmatprep.subr.bf16.mxu0 0
    %332 = vmatpush2.bf16.msra.mxu0 0
    %333 = vmatprep.subr.bf16.mxu0 0
    %334 = vmatpush2.bf16.msra.mxu0 0
    %335 = vmatprep.subr.bf16.mxu0 0
    %336 = vmatpush2.bf16.msra.mxu0 0
    %337 = vmatprep.subr.bf16.mxu0 0
    %338 = vmatpush2.bf16.msra.mxu0 0
    %339 = vmatprep.subr.bf16.mxu0 0
    %340 = vmatpush2.bf16.msra.mxu0 0
    %341 = vmatprep.mubr.bf16.mxu0 0
    %342 = vmatmul.mubr.bf16.gmra.mxu0 %v170
    %v343 = vpop.f32.mrf.mxu0
    %v344 = vadd.f32 %v256, %v343
    %v345 = vpop.f32.mrf.mxu0
    %v346 = vpop.f32.mrf.mxu0
    %v347 = vpop.f32.mrf.mxu0
    %348 = vdwg.mxu0
    %v350 = vlaneseq
    %v351 = vshrl.u32 %v350, 7
    %v352 = vsub.s32 0, %v351
    %v353 = vrot.slane %v167, %v352
    %v355 = vadd.f32 %v344, %v353
    %v356 = vtanh.pop %v355
    %357 = vst [vmem:[#allocation2] sm:$0xff] %v356
    %v358 = vpack.c.bf16 %v356, %v356
    %s359 = scalar_lea.vmem [#allocation2], 8
    %v360 = vld [vmem:[%s359] sm:$0xff]
    %v361 = vpack.c.bf16 %v360, %v360
    %v378 = vunpack.c.l.b16 %v151
    %v379 = vunpack.c.l.b16 %v152
    %v380 = vunpack.c.l.b16 %v153
    %v381 = vunpack.c.l.b16 %v154
    %v382 = vunpack.c.l.b16 %v155
    %v383 = vunpack.c.l.b16 %v156
    %v384 = vunpack.c.l.b16 %v157
    %v385 = vunpack.c.l.b16 %v158
    %v386 = vunpack.c.l.b16 %v159
    %v387 = vunpack.c.l.b16 %v160
    %v388 = vunpack.c.l.b16 %v161
    %v389 = vunpack.c.l.b16 %v162
    %v390 = vunpack.c.l.b16 %v163
    %v391 = vunpack.c.l.b16 %v164
    %v392 = vunpack.c.l.b16 %v165
    %v393 = vunpack.c.l.b16 %v166
    %v394 = vpack.c.b16 %v379, %v378
    %v395 = vpack.c.b16 %v381, %v380
    %v396 = vpack.c.b16 %v383, %v382
    %v397 = vpack.c.b16 %v385, %v384
    %v398 = vpack.c.b16 %v387, %v386
    %v399 = vpack.c.b16 %v389, %v388
    %v400 = vpack.c.b16 %v391, %v390
    %v401 = vpack.c.b16 %v393, %v392
    %410 = vmatprep.subr.bf16.mxu0 0
    %411 = vmatpush1.bf16.msra.mxu0 %v401
    %412 = vmatprep.subr.bf16.mxu0 0
    %413 = vmatpush1.bf16.msra.mxu0 %v400
    %414 = vmatprep.subr.bf16.mxu0 0
    %415 = vmatpush1.bf16.msra.mxu0 %v399
    %416 = vmatprep.subr.bf16.mxu0 0
    %417 = vmatpush1.bf16.msra.mxu0 %v398
    %418 = vmatprep.subr.bf16.mxu0 0
    %419 = vmatpush1.bf16.msra.mxu0 %v397
    %420 = vmatprep.subr.bf16.mxu0 0
    %421 = vmatpush1.bf16.msra.mxu0 %v396
    %422 = vmatprep.subr.bf16.mxu0 0
    %423 = vmatpush1.bf16.msra.mxu0 %v395
    %424 = vmatprep.subr.bf16.mxu0 0
    %425 = vmatpush1.bf16.msra.mxu0 %v394
    %426 = vmatprep.subr.bf16.mxu0 0
    %427 = vmatpush2.bf16.msra.mxu0 0
    %428 = vmatprep.subr.bf16.mxu0 0
    %429 = vmatpush2.bf16.msra.mxu0 0
    %430 = vmatprep.subr.bf16.mxu0 0
    %431 = vmatpush2.bf16.msra.mxu0 0
    %432 = vmatprep.subr.bf16.mxu0 0
    %433 = vmatpush2.bf16.msra.mxu0 0
    %434 = vmatprep.subr.bf16.mxu0 0
    %435 = vmatpush2.bf16.msra.mxu0 0
    %436 = vmatprep.subr.bf16.mxu0 0
    %437 = vmatpush2.bf16.msra.mxu0 0
    %438 = vmatprep.subr.bf16.mxu0 0
    %439 = vmatpush2.bf16.msra.mxu0 0
    %440 = vmatprep.subr.bf16.mxu0 0
    %441 = vmatpush2.bf16.msra.mxu0 0
    %442 = vmatprep.mubr.bf16.mxu0 0
    %443 = vmatmul.mubr.bf16.gmra.mxu0 %v361
    %v444 = vpop.f32.mrf.mxu0
    %v445 = vadd.f32 0.0, %v444
    %v446 = vpop.f32.mrf.mxu0
    %v447 = vpop.f32.mrf.mxu0
    %v448 = vpop.f32.mrf.mxu0
    %449 = vdwg.mxu0
    %v466 = vunpack.c.l.b16 %v118
    %v467 = vunpack.c.l.b16 %v119
    %v468 = vunpack.c.l.b16 %v120
    %v469 = vunpack.c.l.b16 %v121
    %v470 = vunpack.c.l.b16 %v122
    %v471 = vunpack.c.l.b16 %v123
    %v472 = vunpack.c.l.b16 %v124
    %v473 = vunpack.c.l.b16 %v125
    %v474 = vunpack.c.l.b16 %v126
    %v475 = vunpack.c.l.b16 %v127
    %v476 = vunpack.c.l.b16 %v128
    %v477 = vunpack.c.l.b16 %v129
    %v478 = vunpack.c.l.b16 %v130
    %v479 = vunpack.c.l.b16 %v131
    %v480 = vunpack.c.l.b16 %v132
    %v481 = vunpack.c.l.b16 %v133
    %v482 = vpack.c.b16 %v467, %v466
    %v483 = vpack.c.b16 %v469, %v468
    %v484 = vpack.c.b16 %v471, %v470
    %v485 = vpack.c.b16 %v473, %v472
    %v486 = vpack.c.b16 %v475, %v474
    %v487 = vpack.c.b16 %v477, %v476
    %v488 = vpack.c.b16 %v479, %v478
    %v489 = vpack.c.b16 %v481, %v480
    %498 = vmatprep.subr.bf16.mxu0 0
    %499 = vmatpush1.bf16.msra.mxu0 %v489
    %500 = vmatprep.subr.bf16.mxu0 0
    %501 = vmatpush1.bf16.msra.mxu0 %v488
    %502 = vmatprep.subr.bf16.mxu0 0
    %503 = vmatpush1.bf16.msra.mxu0 %v487
    %504 = vmatprep.subr.bf16.mxu0 0
    %505 = vmatpush1.bf16.msra.mxu0 %v486
    %506 = vmatprep.subr.bf16.mxu0 0
    %507 = vmatpush1.bf16.msra.mxu0 %v485
    %508 = vmatprep.subr.bf16.mxu0 0
    %509 = vmatpush1.bf16.msra.mxu0 %v484
    %510 = vmatprep.subr.bf16.mxu0 0
    %511 = vmatpush1.bf16.msra.mxu0 %v483
    %512 = vmatprep.subr.bf16.mxu0 0
    %513 = vmatpush1.bf16.msra.mxu0 %v482
    %514 = vmatprep.subr.bf16.mxu0 0
    %515 = vmatpush2.bf16.msra.mxu0 0
    %516 = vmatprep.subr.bf16.mxu0 0
    %517 = vmatpush2.bf16.msra.mxu0 0
    %518 = vmatprep.subr.bf16.mxu0 0
    %519 = vmatpush2.bf16.msra.mxu0 0
    %520 = vmatprep.subr.bf16.mxu0 0
    %521 = vmatpush2.bf16.msra.mxu0 0
    %522 = vmatprep.subr.bf16.mxu0 0
    %523 = vmatpush2.bf16.msra.mxu0 0
    %524 = vmatprep.subr.bf16.mxu0 0
    %525 = vmatpush2.bf16.msra.mxu0 0
    %526 = vmatprep.subr.bf16.mxu0 0
    %527 = vmatpush2.bf16.msra.mxu0 0
    %528 = vmatprep.subr.bf16.mxu0 0
    %529 = vmatpush2.bf16.msra.mxu0 0
    %530 = vmatprep.mubr.bf16.mxu0 0
    %531 = vmatmul.mubr.bf16.gmra.mxu0 %v358
    %v532 = vpop.f32.mrf.mxu0
    %v533 = vadd.f32 %v445, %v532
    %v534 = vpop.f32.mrf.mxu0
    %v535 = vpop.f32.mrf.mxu0
    %v536 = vpop.f32.mrf.mxu0
    %537 = vdwg.mxu0
    %v539 = vlaneseq
    %v540 = vshrl.u32 %v539, 7
    %v541 = vsub.s32 0, %v540
    %v542 = vrot.slane %v169, %v541
    %v544 = vadd.f32 %v533, %v542
    %v545 = vtanh.pop %v544
    %546 = vst [vmem:[%s359] sm:$0xff] %v545
    %s547 = scalar_lea.vmem [#allocation3], 4
    %v548 = vld [vmem:[%s547] sm:$0xf]
    %v549 = vld [vmem:[#allocation2] sm:$0xff]
    %v550 = vpack.c.bf16 %v549, %v549
    %551 = vmatprep.subr.bf16.mxu0 0
    %552 = vmatpush1.bf16.msra.mxu0 %v212
    %553 = vmatprep.subr.bf16.mxu0 0
    %554 = vmatpush1.bf16.msra.mxu0 %v211
    %555 = vmatprep.subr.bf16.mxu0 0
    %556 = vmatpush1.bf16.msra.mxu0 %v210
    %557 = vmatprep.subr.bf16.mxu0 0
    %558 = vmatpush1.bf16.msra.mxu0 %v209
    %559 = vmatprep.subr.bf16.mxu0 0
    %560 = vmatpush1.bf16.msra.mxu0 %v208
    %561 = vmatprep.subr.bf16.mxu0 0
    %562 = vmatpush1.bf16.msra.mxu0 %v207
    %563 = vmatprep.subr.bf16.mxu0 0
    %564 = vmatpush1.bf16.msra.mxu0 %v206
    %565 = vmatprep.subr.bf16.mxu0 0
    %566 = vmatpush1.bf16.msra.mxu0 %v205
    %567 = vmatprep.subr.bf16.mxu0 0
    %568 = vmatpush2.bf16.msra.mxu0 0
    %569 = vmatprep.subr.bf16.mxu0 0
    %570 = vmatpush2.bf16.msra.mxu0 0
    %571 = vmatprep.subr.bf16.mxu0 0
    %572 = vmatpush2.bf16.msra.mxu0 0
    %573 = vmatprep.subr.bf16.mxu0 0
    %574 = vmatpush2.bf16.msra.mxu0 0
    %575 = vmatprep.subr.bf16.mxu0 0
    %576 = vmatpush2.bf16.msra.mxu0 0
    %577 = vmatprep.subr.bf16.mxu0 0
    %578 = vmatpush2.bf16.msra.mxu0 0
    %579 = vmatprep.subr.bf16.mxu0 0
    %580 = vmatpush2.bf16.msra.mxu0 0
    %581 = vmatprep.subr.bf16.mxu0 0
    %582 = vmatpush2.bf16.msra.mxu0 0
    %583 = vmatprep.mubr.bf16.mxu0 0
    %584 = vmatmul.mubr.bf16.gmra.mxu0 %v550
    %v585 = vpop.f32.mrf.mxu0
    %v586 = vadd.f32 0.0, %v585
    %v587 = vpop.f32.mrf.mxu0
    %v588 = vpop.f32.mrf.mxu0
    %v589 = vpop.f32.mrf.mxu0
    %590 = vdwg.mxu0
    %591 = vmatprep.subr.bf16.mxu0 0
    %592 = vmatpush1.bf16.msra.mxu0 %v300
    %593 = vmatprep.subr.bf16.mxu0 0
    %594 = vmatpush1.bf16.msra.mxu0 %v299
    %595 = vmatprep.subr.bf16.mxu0 0
    %596 = vmatpush1.bf16.msra.mxu0 %v298
    %597 = vmatprep.subr.bf16.mxu0 0
    %598 = vmatpush1.bf16.msra.mxu0 %v297
    %599 = vmatprep.subr.bf16.mxu0 0
    %600 = vmatpush1.bf16.msra.mxu0 %v296
    %601 = vmatprep.subr.bf16.mxu0 0
    %602 = vmatpush1.bf16.msra.mxu0 %v295
    %603 = vmatprep.subr.bf16.mxu0 0
    %604 = vmatpush1.bf16.msra.mxu0 %v294
    %605 = vmatprep.subr.bf16.mxu0 0
    %606 = vmatpush1.bf16.msra.mxu0 %v293
    %607 = vmatprep.subr.bf16.mxu0 0
    %608 = vmatpush2.bf16.msra.mxu0 0
    %609 = vmatprep.subr.bf16.mxu0 0
    %610 = vmatpush2.bf16.msra.mxu0 0
    %611 = vmatprep.subr.bf16.mxu0 0
    %612 = vmatpush2.bf16.msra.mxu0 0
    %613 = vmatprep.subr.bf16.mxu0 0
    %614 = vmatpush2.bf16.msra.mxu0 0
    %615 = vmatprep.subr.bf16.mxu0 0
    %616 = vmatpush2.bf16.msra.mxu0 0
    %617 = vmatprep.subr.bf16.mxu0 0
    %618 = vmatpush2.bf16.msra.mxu0 0
    %619 = vmatprep.subr.bf16.mxu0 0
    %620 = vmatpush2.bf16.msra.mxu0 0
    %621 = vmatprep.subr.bf16.mxu0 0
    %622 = vmatpush2.bf16.msra.mxu0 0
    %623 = vmatprep.mubr.bf16.mxu0 0
    %624 = vmatmul.mubr.bf16.gmra.mxu0 %v548
    %v625 = vpop.f32.mrf.mxu0
    %v626 = vadd.f32 %v586, %v625
    %v627 = vpop.f32.mrf.mxu0
    %v628 = vpop.f32.mrf.mxu0
    %v629 = vpop.f32.mrf.mxu0
    %630 = vdwg.mxu0
    %v631 = vadd.f32 %v626, %v353
    %v632 = vtanh.pop %v631
    %633 = vst [vmem:[#allocation2] sm:$0xff] %v632
    %v634 = vpack.c.bf16 %v632, %v632
    %v635 = vld [vmem:[%s359] sm:$0xff]
    %v636 = vpack.c.bf16 %v635, %v635
    %637 = vmatprep.subr.bf16.mxu0 0
    %638 = vmatpush1.bf16.msra.mxu0 %v401
    %639 = vmatprep.subr.bf16.mxu0 0
    %640 = vmatpush1.bf16.msra.mxu0 %v400
    %641 = vmatprep.subr.bf16.mxu0 0
    %642 = vmatpush1.bf16.msra.mxu0 %v399
    %643 = vmatprep.subr.bf16.mxu0 0
    %644 = vmatpush1.bf16.msra.mxu0 %v398
    %645 = vmatprep.subr.bf16.mxu0 0
    %646 = vmatpush1.bf16.msra.mxu0 %v397
    %647 = vmatprep.subr.bf16.mxu0 0
    %648 = vmatpush1.bf16.msra.mxu0 %v396
    %649 = vmatprep.subr.bf16.mxu0 0
    %650 = vmatpush1.bf16.msra.mxu0 %v395
    %651 = vmatprep.subr.bf16.mxu0 0
    %652 = vmatpush1.bf16.msra.mxu0 %v394
    %653 = vmatprep.subr.bf16.mxu0 0
    %654 = vmatpush2.bf16.msra.mxu0 0
    %655 = vmatprep.subr.bf16.mxu0 0
    %656 = vmatpush2.bf16.msra.mxu0 0
    %657 = vmatprep.subr.bf16.mxu0 0
    %658 = vmatpush2.bf16.msra.mxu0 0
    %659 = vmatprep.subr.bf16.mxu0 0
    %660 = vmatpush2.bf16.msra.mxu0 0
    %661 = vmatprep.subr.bf16.mxu0 0
    %662 = vmatpush2.bf16.msra.mxu0 0
    %663 = vmatprep.subr.bf16.mxu0 0
    %664 = vmatpush2.bf16.msra.mxu0 0
    %665 = vmatprep.subr.bf16.mxu0 0
    %666 = vmatpush2.bf16.msra.mxu0 0
    %667 = vmatprep.subr.bf16.mxu0 0
    %668 = vmatpush2.bf16.msra.mxu0 0
    %669 = vmatprep.mubr.bf16.mxu0 0
    %670 = vmatmul.mubr.bf16.gmra.mxu0 %v636
    %v671 = vpop.f32.mrf.mxu0
    %v672 = vadd.f32 0.0, %v671
    %v673 = vpop.f32.mrf.mxu0
    %v674 = vpop.f32.mrf.mxu0
    %v675 = vpop.f32.mrf.mxu0
    %676 = vdwg.mxu0
    %677 = vmatprep.subr.bf16.mxu0 0
    %678 = vmatpush1.bf16.msra.mxu0 %v489
    %679 = vmatprep.subr.bf16.mxu0 0
    %680 = vmatpush1.bf16.msra.mxu0 %v488
    %681 = vmatprep.subr.bf16.mxu0 0
    %682 = vmatpush1.bf16.msra.mxu0 %v487
    %683 = vmatprep.subr.bf16.mxu0 0
    %684 = vmatpush1.bf16.msra.mxu0 %v486
    %685 = vmatprep.subr.bf16.mxu0 0
    %686 = vmatpush1.bf16.msra.mxu0 %v485
    %687 = vmatprep.subr.bf16.mxu0 0
    %688 = vmatpush1.bf16.msra.mxu0 %v484
    %689 = vmatprep.subr.bf16.mxu0 0
    %690 = vmatpush1.bf16.msra.mxu0 %v483
    %691 = vmatprep.subr.bf16.mxu0 0
    %692 = vmatpush1.bf16.msra.mxu0 %v482
    %693 = vmatprep.subr.bf16.mxu0 0
    %694 = vmatpush2.bf16.msra.mxu0 0
    %695 = vmatprep.subr.bf16.mxu0 0
    %696 = vmatpush2.bf16.msra.mxu0 0
    %697 = vmatprep.subr.bf16.mxu0 0
    %698 = vmatpush2.bf16.msra.mxu0 0
    %699 = vmatprep.subr.bf16.mxu0 0
    %700 = vmatpush2.bf16.msra.mxu0 0
    %701 = vmatprep.subr.bf16.mxu0 0
    %702 = vmatpush2.bf16.msra.mxu0 0
    %703 = vmatprep.subr.bf16.mxu0 0
    %704 = vmatpush2.bf16.msra.mxu0 0
    %705 = vmatprep.subr.bf16.mxu0 0
    %706 = vmatpush2.bf16.msra.mxu0 0
    %707 = vmatprep.subr.bf16.mxu0 0
    %708 = vmatpush2.bf16.msra.mxu0 0
    %709 = vmatprep.mubr.bf16.mxu0 0
    %710 = vmatmul.mubr.bf16.gmra.mxu0 %v634
    %v711 = vpop.f32.mrf.mxu0
    %v712 = vadd.f32 %v672, %v711
    %v713 = vpop.f32.mrf.mxu0
    %v714 = vpop.f32.mrf.mxu0
    %v715 = vpop.f32.mrf.mxu0
    %716 = vdwg.mxu0
    %v717 = vadd.f32 %v712, %v542
    %v718 = vtanh.pop %v717
    %719 = vst [vmem:[%s359] sm:$0xff] %v718
    %s720 = scalar_lea.vmem [#allocation3], 8
    %v721 = vld [vmem:[%s720] sm:$0xf]
    %v722 = vld [vmem:[#allocation2] sm:$0xff]
    %v723 = vpack.c.bf16 %v722, %v722
    %724 = vmatprep.subr.bf16.mxu0 0
    %725 = vmatpush1.bf16.msra.mxu0 %v212
    %726 = vmatprep.subr.bf16.mxu0 0
    %727 = vmatpush1.bf16.msra.mxu0 %v211
    %728 = vmatprep.subr.bf16.mxu0 0
    %729 = vmatpush1.bf16.msra.mxu0 %v210
    %730 = vmatprep.subr.bf16.mxu0 0
    %731 = vmatpush1.bf16.msra.mxu0 %v209
    %732 = vmatprep.subr.bf16.mxu0 0
    %733 = vmatpush1.bf16.msra.mxu0 %v208
    %734 = vmatprep.subr.bf16.mxu0 0
    %735 = vmatpush1.bf16.msra.mxu0 %v207
    %736 = vmatprep.subr.bf16.mxu0 0
    %737 = vmatpush1.bf16.msra.mxu0 %v206
    %738 = vmatprep.subr.bf16.mxu0 0
    %739 = vmatpush1.bf16.msra.mxu0 %v205
    %740 = vmatprep.subr.bf16.mxu0 0
    %741 = vmatpush2.bf16.msra.mxu0 0
    %742 = vmatprep.subr.bf16.mxu0 0
    %743 = vmatpush2.bf16.msra.mxu0 0
    %744 = vmatprep.subr.bf16.mxu0 0
    %745 = vmatpush2.bf16.msra.mxu0 0
    %746 = vmatprep.subr.bf16.mxu0 0
    %747 = vmatpush2.bf16.msra.mxu0 0
    %748 = vmatprep.subr.bf16.mxu0 0
    %749 = vmatpush2.bf16.msra.mxu0 0
    %750 = vmatprep.subr.bf16.mxu0 0
    %751 = vmatpush2.bf16.msra.mxu0 0
    %752 = vmatprep.subr.bf16.mxu0 0
    %753 = vmatpush2.bf16.msra.mxu0 0
    %754 = vmatprep.subr.bf16.mxu0 0
    %755 = vmatpush2.bf16.msra.mxu0 0
    %756 = vmatprep.mubr.bf16.mxu0 0
    %757 = vmatmul.mubr.bf16.gmra.mxu0 %v723
    %v758 = vpop.f32.mrf.mxu0
    %v759 = vadd.f32 0.0, %v758
    %v760 = vpop.f32.mrf.mxu0
    %v761 = vpop.f32.mrf.mxu0
    %v762 = vpop.f32.mrf.mxu0
    %763 = vdwg.mxu0
    %764 = vmatprep.subr.bf16.mxu0 0
    %765 = vmatpush1.bf16.msra.mxu0 %v300
    %766 = vmatprep.subr.bf16.mxu0 0
    %767 = vmatpush1.bf16.msra.mxu0 %v299
    %768 = vmatprep.subr.bf16.mxu0 0
    %769 = vmatpush1.bf16.msra.mxu0 %v298
    %770 = vmatprep.subr.bf16.mxu0 0
    %771 = vmatpush1.bf16.msra.mxu0 %v297
    %772 = vmatprep.subr.bf16.mxu0 0
    %773 = vmatpush1.bf16.msra.mxu0 %v296
    %774 = vmatprep.subr.bf16.mxu0 0
    %775 = vmatpush1.bf16.msra.mxu0 %v295
    %776 = vmatprep.subr.bf16.mxu0 0
    %777 = vmatpush1.bf16.msra.mxu0 %v294
    %778 = vmatprep.subr.bf16.mxu0 0
    %779 = vmatpush1.bf16.msra.mxu0 %v293
    %780 = vmatprep.subr.bf16.mxu0 0
    %781 = vmatpush2.bf16.msra.mxu0 0
    %782 = vmatprep.subr.bf16.mxu0 0
    %783 = vmatpush2.bf16.msra.mxu0 0
    %784 = vmatprep.subr.bf16.mxu0 0
    %785 = vmatpush2.bf16.msra.mxu0 0
    %786 = vmatprep.subr.bf16.mxu0 0
    %787 = vmatpush2.bf16.msra.mxu0 0
    %788 = vmatprep.subr.bf16.mxu0 0
    %789 = vmatpush2.bf16.msra.mxu0 0
    %790 = vmatprep.subr.bf16.mxu0 0
    %791 = vmatpush2.bf16.msra.mxu0 0
    %792 = vmatprep.subr.bf16.mxu0 0
    %793 = vmatpush2.bf16.msra.mxu0 0
    %794 = vmatprep.subr.bf16.mxu0 0
    %795 = vmatpush2.bf16.msra.mxu0 0
    %796 = vmatprep.mubr.bf16.mxu0 0
    %797 = vmatmul.mubr.bf16.gmra.mxu0 %v721
    %v798 = vpop.f32.mrf.mxu0
    %v799 = vadd.f32 %v759, %v798
    %v800 = vpop.f32.mrf.mxu0
    %v801 = vpop.f32.mrf.mxu0
    %v802 = vpop.f32.mrf.mxu0
    %803 = vdwg.mxu0
    %v804 = vadd.f32 %v799, %v353
    %v805 = vtanh.pop %v804
    %806 = vst [vmem:[#allocation2] sm:$0xff] %v805
    %v807 = vpack.c.bf16 %v805, %v805
    %v808 = vld [vmem:[%s359] sm:$0xff]
    %v809 = vpack.c.bf16 %v808, %v808
    %810 = vmatprep.subr.bf16.mxu0 0
    %811 = vmatpush1.bf16.msra.mxu0 %v401
    %812 = vmatprep.subr.bf16.mxu0 0
    %813 = vmatpush1.bf16.msra.mxu0 %v400
    %814 = vmatprep.subr.bf16.mxu0 0
    %815 = vmatpush1.bf16.msra.mxu0 %v399
    %816 = vmatprep.subr.bf16.mxu0 0
    %817 = vmatpush1.bf16.msra.mxu0 %v398
    %818 = vmatprep.subr.bf16.mxu0 0
    %819 = vmatpush1.bf16.msra.mxu0 %v397
    %820 = vmatprep.subr.bf16.mxu0 0
    %821 = vmatpush1.bf16.msra.mxu0 %v396
    %822 = vmatprep.subr.bf16.mxu0 0
    %823 = vmatpush1.bf16.msra.mxu0 %v395
    %824 = vmatprep.subr.bf16.mxu0 0
    %825 = vmatpush1.bf16.msra.mxu0 %v394
    %826 = vmatprep.subr.bf16.mxu0 0
    %827 = vmatpush2.bf16.msra.mxu0 0
    %828 = vmatprep.subr.bf16.mxu0 0
    %829 = vmatpush2.bf16.msra.mxu0 0
    %830 = vmatprep.subr.bf16.mxu0 0
    %831 = vmatpush2.bf16.msra.mxu0 0
    %832 = vmatprep.subr.bf16.mxu0 0
    %833 = vmatpush2.bf16.msra.mxu0 0
    %834 = vmatprep.subr.bf16.mxu0 0
    %835 = vmatpush2.bf16.msra.mxu0 0
    %836 = vmatprep.subr.bf16.mxu0 0
    %837 = vmatpush2.bf16.msra.mxu0 0
    %838 = vmatprep.subr.bf16.mxu0 0
    %839 = vmatpush2.bf16.msra.mxu0 0
    %840 = vmatprep.subr.bf16.mxu0 0
    %841 = vmatpush2.bf16.msra.mxu0 0
    %842 = vmatprep.mubr.bf16.mxu0 0
    %843 = vmatmul.mubr.bf16.gmra.mxu0 %v809
    %v844 = vpop.f32.mrf.mxu0
    %v845 = vadd.f32 0.0, %v844
    %v846 = vpop.f32.mrf.mxu0
    %v847 = vpop.f32.mrf.mxu0
    %v848 = vpop.f32.mrf.mxu0
    %849 = vdwg.mxu0
    %850 = vmatprep.subr.bf16.mxu0 0
    %851 = vmatpush1.bf16.msra.mxu0 %v489
    %852 = vmatprep.subr.bf16.mxu0 0
    %853 = vmatpush1.bf16.msra.mxu0 %v488
    %854 = vmatprep.subr.bf16.mxu0 0
    %855 = vmatpush1.bf16.msra.mxu0 %v487
    %856 = vmatprep.subr.bf16.mxu0 0
    %857 = vmatpush1.bf16.msra.mxu0 %v486
    %858 = vmatprep.subr.bf16.mxu0 0
    %859 = vmatpush1.bf16.msra.mxu0 %v485
    %860 = vmatprep.subr.bf16.mxu0 0
    %861 = vmatpush1.bf16.msra.mxu0 %v484
    %862 = vmatprep.subr.bf16.mxu0 0
    %863 = vmatpush1.bf16.msra.mxu0 %v483
    %864 = vmatprep.subr.bf16.mxu0 0
    %865 = vmatpush1.bf16.msra.mxu0 %v482
    %866 = vmatprep.subr.bf16.mxu0 0
    %867 = vmatpush2.bf16.msra.mxu0 0
    %868 = vmatprep.subr.bf16.mxu0 0
    %869 = vmatpush2.bf16.msra.mxu0 0
    %870 = vmatprep.subr.bf16.mxu0 0
    %871 = vmatpush2.bf16.msra.mxu0 0
    %872 = vmatprep.subr.bf16.mxu0 0
    %873 = vmatpush2.bf16.msra.mxu0 0
    %874 = vmatprep.subr.bf16.mxu0 0
    %875 = vmatpush2.bf16.msra.mxu0 0
    %876 = vmatprep.subr.bf16.mxu0 0
    %877 = vmatpush2.bf16.msra.mxu0 0
    %878 = vmatprep.subr.bf16.mxu0 0
    %879 = vmatpush2.bf16.msra.mxu0 0
    %880 = vmatprep.subr.bf16.mxu0 0
    %881 = vmatpush2.bf16.msra.mxu0 0
    %882 = vmatprep.mubr.bf16.mxu0 0
    %883 = vmatmul.mubr.bf16.gmra.mxu0 %v807
    %v884 = vpop.f32.mrf.mxu0
    %v885 = vadd.f32 %v845, %v884
    %v886 = vpop.f32.mrf.mxu0
    %v887 = vpop.f32.mrf.mxu0
    %v888 = vpop.f32.mrf.mxu0
    %889 = vdwg.mxu0
    %v890 = vadd.f32 %v885, %v542
    %v891 = vtanh.pop %v890
    %892 = vst [vmem:[%s359] sm:$0xff] %v891
    %s893 = scalar_lea.vmem [#allocation3], 12
    %v894 = vld [vmem:[%s893] sm:$0xf]
    %v895 = vld [vmem:[#allocation2] sm:$0xff]
    %v896 = vpack.c.bf16 %v895, %v895
    %897 = vmatprep.subr.bf16.mxu0 0
    %898 = vmatpush1.bf16.msra.mxu0 %v212
    %899 = vmatprep.subr.bf16.mxu0 0
    %900 = vmatpush1.bf16.msra.mxu0 %v211
    %901 = vmatprep.subr.bf16.mxu0 0
    %902 = vmatpush1.bf16.msra.mxu0 %v210
    %903 = vmatprep.subr.bf16.mxu0 0
    %904 = vmatpush1.bf16.msra.mxu0 %v209
    %905 = vmatprep.subr.bf16.mxu0 0
    %906 = vmatpush1.bf16.msra.mxu0 %v208
    %907 = vmatprep.subr.bf16.mxu0 0
    %908 = vmatpush1.bf16.msra.mxu0 %v207
    %909 = vmatprep.subr.bf16.mxu0 0
    %910 = vmatpush1.bf16.msra.mxu0 %v206
    %911 = vmatprep.subr.bf16.mxu0 0
    %912 = vmatpush1.bf16.msra.mxu0 %v205
    %913 = vmatprep.subr.bf16.mxu0 0
    %914 = vmatpush2.bf16.msra.mxu0 0
    %915 = vmatprep.subr.bf16.mxu0 0
    %916 = vmatpush2.bf16.msra.mxu0 0
    %917 = vmatprep.subr.bf16.mxu0 0
    %918 = vmatpush2.bf16.msra.mxu0 0
    %919 = vmatprep.subr.bf16.mxu0 0
    %920 = vmatpush2.bf16.msra.mxu0 0
    %921 = vmatprep.subr.bf16.mxu0 0
    %922 = vmatpush2.bf16.msra.mxu0 0
    %923 = vmatprep.subr.bf16.mxu0 0
    %924 = vmatpush2.bf16.msra.mxu0 0
    %925 = vmatprep.subr.bf16.mxu0 0
    %926 = vmatpush2.bf16.msra.mxu0 0
    %927 = vmatprep.subr.bf16.mxu0 0
    %928 = vmatpush2.bf16.msra.mxu0 0
    %929 = vmatprep.mubr.bf16.mxu0 0
    %930 = vmatmul.mubr.bf16.gmra.mxu0 %v896
    %v931 = vpop.f32.mrf.mxu0
    %v932 = vadd.f32 0.0, %v931
    %v933 = vpop.f32.mrf.mxu0
    %v934 = vpop.f32.mrf.mxu0
    %v935 = vpop.f32.mrf.mxu0
    %936 = vdwg.mxu0
    %937 = vmatprep.subr.bf16.mxu0 0
    %938 = vmatpush1.bf16.msra.mxu0 %v300
    %939 = vmatprep.subr.bf16.mxu0 0
    %940 = vmatpush1.bf16.msra.mxu0 %v299
    %941 = vmatprep.subr.bf16.mxu0 0
    %942 = vmatpush1.bf16.msra.mxu0 %v298
    %943 = vmatprep.subr.bf16.mxu0 0
    %944 = vmatpush1.bf16.msra.mxu0 %v297
    %945 = vmatprep.subr.bf16.mxu0 0
    %946 = vmatpush1.bf16.msra.mxu0 %v296
    %947 = vmatprep.subr.bf16.mxu0 0
    %948 = vmatpush1.bf16.msra.mxu0 %v295
    %949 = vmatprep.subr.bf16.mxu0 0
    %950 = vmatpush1.bf16.msra.mxu0 %v294
    %951 = vmatprep.subr.bf16.mxu0 0
    %952 = vmatpush1.bf16.msra.mxu0 %v293
    %953 = vmatprep.subr.bf16.mxu0 0
    %954 = vmatpush2.bf16.msra.mxu0 0
    %955 = vmatprep.subr.bf16.mxu0 0
    %956 = vmatpush2.bf16.msra.mxu0 0
    %957 = vmatprep.subr.bf16.mxu0 0
    %958 = vmatpush2.bf16.msra.mxu0 0
    %959 = vmatprep.subr.bf16.mxu0 0
    %960 = vmatpush2.bf16.msra.mxu0 0
    %961 = vmatprep.subr.bf16.mxu0 0
    %962 = vmatpush2.bf16.msra.mxu0 0
    %963 = vmatprep.subr.bf16.mxu0 0
    %964 = vmatpush2.bf16.msra.mxu0 0
    %965 = vmatprep.subr.bf16.mxu0 0
    %966 = vmatpush2.bf16.msra.mxu0 0
    %967 = vmatprep.subr.bf16.mxu0 0
    %968 = vmatpush2.bf16.msra.mxu0 0
    %969 = vmatprep.mubr.bf16.mxu0 0
    %970 = vmatmul.mubr.bf16.gmra.mxu0 %v894
    %v971 = vpop.f32.mrf.mxu0
    %v972 = vadd.f32 %v932, %v971
    %v973 = vpop.f32.mrf.mxu0
    %v974 = vpop.f32.mrf.mxu0
    %v975 = vpop.f32.mrf.mxu0
    %976 = vdwg.mxu0
    %v977 = vadd.f32 %v972, %v353
    %v978 = vtanh.pop %v977
    %979 = vst [vmem:[#allocation2] sm:$0xff] %v978
    %v980 = vpack.c.bf16 %v978, %v978
    %v981 = vld [vmem:[%s359] sm:$0xff]
    %v982 = vpack.c.bf16 %v981, %v981
    %983 = vmatprep.subr.bf16.mxu0 0
    %984 = vmatpush1.bf16.msra.mxu0 %v401
    %985 = vmatprep.subr.bf16.mxu0 0
    %986 = vmatpush1.bf16.msra.mxu0 %v400
    %987 = vmatprep.subr.bf16.mxu0 0
    %988 = vmatpush1.bf16.msra.mxu0 %v399
    %989 = vmatprep.subr.bf16.mxu0 0
    %990 = vmatpush1.bf16.msra.mxu0 %v398
    %991 = vmatprep.subr.bf16.mxu0 0
    %992 = vmatpush1.bf16.msra.mxu0 %v397
    %993 = vmatprep.subr.bf16.mxu0 0
    %994 = vmatpush1.bf16.msra.mxu0 %v396
    %995 = vmatprep.subr.bf16.mxu0 0
    %996 = vmatpush1.bf16.msra.mxu0 %v395
    %997 = vmatprep.subr.bf16.mxu0 0
    %998 = vmatpush1.bf16.msra.mxu0 %v394
    %999 = vmatprep.subr.bf16.mxu0 0
    %1000 = vmatpush2.bf16.msra.mxu0 0
    %1001 = vmatprep.subr.bf16.mxu0 0
    %1002 = vmatpush2.bf16.msra.mxu0 0
    %1003 = vmatprep.subr.bf16.mxu0 0
    %1004 = vmatpush2.bf16.msra.mxu0 0
    %1005 = vmatprep.subr.bf16.mxu0 0
    %1006 = vmatpush2.bf16.msra.mxu0 0
    %1007 = vmatprep.subr.bf16.mxu0 0
    %1008 = vmatpush2.bf16.msra.mxu0 0
    %1009 = vmatprep.subr.bf16.mxu0 0
    %1010 = vmatpush2.bf16.msra.mxu0 0
    %1011 = vmatprep.subr.bf16.mxu0 0
    %1012 = vmatpush2.bf16.msra.mxu0 0
    %1013 = vmatprep.subr.bf16.mxu0 0
    %1014 = vmatpush2.bf16.msra.mxu0 0
    %1015 = vmatprep.mubr.bf16.mxu0 0
    %1016 = vmatmul.mubr.bf16.gmra.mxu0 %v982
    %v1017 = vpop.f32.mrf.mxu0
    %v1018 = vadd.f32 0.0, %v1017
    %v1019 = vpop.f32.mrf.mxu0
    %v1020 = vpop.f32.mrf.mxu0
    %v1021 = vpop.f32.mrf.mxu0
    %1022 = vdwg.mxu0
    %1023 = vmatprep.subr.bf16.mxu0 0
    %1024 = vmatpush1.bf16.msra.mxu0 %v489
    %1025 = vmatprep.subr.bf16.mxu0 0
    %1026 = vmatpush1.bf16.msra.mxu0 %v488
    %1027 = vmatprep.subr.bf16.mxu0 0
    %1028 = vmatpush1.bf16.msra.mxu0 %v487
    %1029 = vmatprep.subr.bf16.mxu0 0
    %1030 = vmatpush1.bf16.msra.mxu0 %v486
    %1031 = vmatprep.subr.bf16.mxu0 0
    %1032 = vmatpush1.bf16.msra.mxu0 %v485
    %1033 = vmatprep.subr.bf16.mxu0 0
    %1034 = vmatpush1.bf16.msra.mxu0 %v484
    %1035 = vmatprep.subr.bf16.mxu0 0
    %1036 = vmatpush1.bf16.msra.mxu0 %v483
    %1037 = vmatprep.subr.bf16.mxu0 0
    %1038 = vmatpush1.bf16.msra.mxu0 %v482
    %1039 = vmatprep.subr.bf16.mxu0 0
    %1040 = vmatpush2.bf16.msra.mxu0 0
    %1041 = vmatprep.subr.bf16.mxu0 0
    %1042 = vmatpush2.bf16.msra.mxu0 0
    %1043 = vmatprep.subr.bf16.mxu0 0
    %1044 = vmatpush2.bf16.msra.mxu0 0
    %1045 = vmatprep.subr.bf16.mxu0 0
    %1046 = vmatpush2.bf16.msra.mxu0 0
    %1047 = vmatprep.subr.bf16.mxu0 0
    %1048 = vmatpush2.bf16.msra.mxu0 0
    %1049 = vmatprep.subr.bf16.mxu0 0
    %1050 = vmatpush2.bf16.msra.mxu0 0
    %1051 = vmatprep.subr.bf16.mxu0 0
    %1052 = vmatpush2.bf16.msra.mxu0 0
    %1053 = vmatprep.subr.bf16.mxu0 0
    %1054 = vmatpush2.bf16.msra.mxu0 0
    %1055 = vmatprep.mubr.bf16.mxu0 0
    %1056 = vmatmul.mubr.bf16.gmra.mxu0 %v980
    %v1057 = vpop.f32.mrf.mxu0
    %v1058 = vadd.f32 %v1018, %v1057
    %v1059 = vpop.f32.mrf.mxu0
    %v1060 = vpop.f32.mrf.mxu0
    %v1061 = vpop.f32.mrf.mxu0
    %1062 = vdwg.mxu0
    %v1063 = vadd.f32 %v1058, %v542
    %v1064 = vtanh.pop %v1063
    %1065 = vst [vmem:[%s359] sm:$0xff] %v1064
    %s1066 = scalar_lea.vmem [#allocation3], 16
    %v1067 = vld [vmem:[%s1066] sm:$0xf]
    %v1068 = vld [vmem:[#allocation2] sm:$0xff]
    %v1069 = vpack.c.bf16 %v1068, %v1068
    %1070 = vmatprep.subr.bf16.mxu0 0
    %1071 = vmatpush1.bf16.msra.mxu0 %v212
    %1072 = vmatprep.subr.bf16.mxu0 0
    %1073 = vmatpush1.bf16.msra.mxu0 %v211
    %1074 = vmatprep.subr.bf16.mxu0 0
    %1075 = vmatpush1.bf16.msra.mxu0 %v210
    %1076 = vmatprep.subr.bf16.mxu0 0
    %1077 = vmatpush1.bf16.msra.mxu0 %v209
    %1078 = vmatprep.subr.bf16.mxu0 0
    %1079 = vmatpush1.bf16.msra.mxu0 %v208
    %1080 = vmatprep.subr.bf16.mxu0 0
    %1081 = vmatpush1.bf16.msra.mxu0 %v207
    %1082 = vmatprep.subr.bf16.mxu0 0
    %1083 = vmatpush1.bf16.msra.mxu0 %v206
    %1084 = vmatprep.subr.bf16.mxu0 0
    %1085 = vmatpush1.bf16.msra.mxu0 %v205
    %1086 = vmatprep.subr.bf16.mxu0 0
    %1087 = vmatpush2.bf16.msra.mxu0 0
    %1088 = vmatprep.subr.bf16.mxu0 0
    %1089 = vmatpush2.bf16.msra.mxu0 0
    %1090 = vmatprep.subr.bf16.mxu0 0
    %1091 = vmatpush2.bf16.msra.mxu0 0
    %1092 = vmatprep.subr.bf16.mxu0 0
    %1093 = vmatpush2.bf16.msra.mxu0 0
    %1094 = vmatprep.subr.bf16.mxu0 0
    %1095 = vmatpush2.bf16.msra.mxu0 0
    %1096 = vmatprep.subr.bf16.mxu0 0
    %1097 = vmatpush2.bf16.msra.mxu0 0
    %1098 = vmatprep.subr.bf16.mxu0 0
    %1099 = vmatpush2.bf16.msra.mxu0 0
    %1100 = vmatprep.subr.bf16.mxu0 0
    %1101 = vmatpush2.bf16.msra.mxu0 0
    %1102 = vmatprep.mubr.bf16.mxu0 0
    %1103 = vmatmul.mubr.bf16.gmra.mxu0 %v1069
    %v1104 = vpop.f32.mrf.mxu0
    %v1105 = vadd.f32 0.0, %v1104
    %v1106 = vpop.f32.mrf.mxu0
    %v1107 = vpop.f32.mrf.mxu0
    %v1108 = vpop.f32.mrf.mxu0
    %1109 = vdwg.mxu0
    %1110 = vmatprep.subr.bf16.mxu0 0
    %1111 = vmatpush1.bf16.msra.mxu0 %v300
    %1112 = vmatprep.subr.bf16.mxu0 0
    %1113 = vmatpush1.bf16.msra.mxu0 %v299
    %1114 = vmatprep.subr.bf16.mxu0 0
    %1115 = vmatpush1.bf16.msra.mxu0 %v298
    %1116 = vmatprep.subr.bf16.mxu0 0
    %1117 = vmatpush1.bf16.msra.mxu0 %v297
    %1118 = vmatprep.subr.bf16.mxu0 0
    %1119 = vmatpush1.bf16.msra.mxu0 %v296
    %1120 = vmatprep.subr.bf16.mxu0 0
    %1121 = vmatpush1.bf16.msra.mxu0 %v295
    %1122 = vmatprep.subr.bf16.mxu0 0
    %1123 = vmatpush1.bf16.msra.mxu0 %v294
    %1124 = vmatprep.subr.bf16.mxu0 0
    %1125 = vmatpush1.bf16.msra.mxu0 %v293
    %1126 = vmatprep.subr.bf16.mxu0 0
    %1127 = vmatpush2.bf16.msra.mxu0 0
    %1128 = vmatprep.subr.bf16.mxu0 0
    %1129 = vmatpush2.bf16.msra.mxu0 0
    %1130 = vmatprep.subr.bf16.mxu0 0
    %1131 = vmatpush2.bf16.msra.mxu0 0
    %1132 = vmatprep.subr.bf16.mxu0 0
    %1133 = vmatpush2.bf16.msra.mxu0 0
    %1134 = vmatprep.subr.bf16.mxu0 0
    %1135 = vmatpush2.bf16.msra.mxu0 0
    %1136 = vmatprep.subr.bf16.mxu0 0
    %1137 = vmatpush2.bf16.msra.mxu0 0
    %1138 = vmatprep.subr.bf16.mxu0 0
    %1139 = vmatpush2.bf16.msra.mxu0 0
    %1140 = vmatprep.subr.bf16.mxu0 0
    %1141 = vmatpush2.bf16.msra.mxu0 0
    %1142 = vmatprep.mubr.bf16.mxu0 0
    %1143 = vmatmul.mubr.bf16.gmra.mxu0 %v1067
    %v1144 = vpop.f32.mrf.mxu0
    %v1145 = vadd.f32 %v1105, %v1144
    %v1146 = vpop.f32.mrf.mxu0
    %v1147 = vpop.f32.mrf.mxu0
    %v1148 = vpop.f32.mrf.mxu0
    %1149 = vdwg.mxu0
    %v1150 = vadd.f32 %v1145, %v353
    %v1151 = vtanh.pop %v1150
    %1152 = vst [vmem:[#allocation2] sm:$0xff] %v1151
    %v1153 = vpack.c.bf16 %v1151, %v1151
    %v1154 = vld [vmem:[%s359] sm:$0xff]
    %v1155 = vpack.c.bf16 %v1154, %v1154
    %1156 = vmatprep.subr.bf16.mxu0 0
    %1157 = vmatpush1.bf16.msra.mxu0 %v401
    %1158 = vmatprep.subr.bf16.mxu0 0
    %1159 = vmatpush1.bf16.msra.mxu0 %v400
    %1160 = vmatprep.subr.bf16.mxu0 0
    %1161 = vmatpush1.bf16.msra.mxu0 %v399
    %1162 = vmatprep.subr.bf16.mxu0 0
    %1163 = vmatpush1.bf16.msra.mxu0 %v398
    %1164 = vmatprep.subr.bf16.mxu0 0
    %1165 = vmatpush1.bf16.msra.mxu0 %v397
    %1166 = vmatprep.subr.bf16.mxu0 0
    %1167 = vmatpush1.bf16.msra.mxu0 %v396
    %1168 = vmatprep.subr.bf16.mxu0 0
    %1169 = vmatpush1.bf16.msra.mxu0 %v395
    %1170 = vmatprep.subr.bf16.mxu0 0
    %1171 = vmatpush1.bf16.msra.mxu0 %v394
    %1172 = vmatprep.subr.bf16.mxu0 0
    %1173 = vmatpush2.bf16.msra.mxu0 0
    %1174 = vmatprep.subr.bf16.mxu0 0
    %1175 = vmatpush2.bf16.msra.mxu0 0
    %1176 = vmatprep.subr.bf16.mxu0 0
    %1177 = vmatpush2.bf16.msra.mxu0 0
    %1178 = vmatprep.subr.bf16.mxu0 0
    %1179 = vmatpush2.bf16.msra.mxu0 0
    %1180 = vmatprep.subr.bf16.mxu0 0
    %1181 = vmatpush2.bf16.msra.mxu0 0
    %1182 = vmatprep.subr.bf16.mxu0 0
    %1183 = vmatpush2.bf16.msra.mxu0 0
    %1184 = vmatprep.subr.bf16.mxu0 0
    %1185 = vmatpush2.bf16.msra.mxu0 0
    %1186 = vmatprep.subr.bf16.mxu0 0
    %1187 = vmatpush2.bf16.msra.mxu0 0
    %1188 = vmatprep.mubr.bf16.mxu0 0
    %1189 = vmatmul.mubr.bf16.gmra.mxu0 %v1155
    %v1190 = vpop.f32.mrf.mxu0
    %v1191 = vadd.f32 0.0, %v1190
    %v1192 = vpop.f32.mrf.mxu0
    %v1193 = vpop.f32.mrf.mxu0
    %v1194 = vpop.f32.mrf.mxu0
    %1195 = vdwg.mxu0
    %1196 = vmatprep.subr.bf16.mxu0 0
    %1197 = vmatpush1.bf16.msra.mxu0 %v489
    %1198 = vmatprep.subr.bf16.mxu0 0
    %1199 = vmatpush1.bf16.msra.mxu0 %v488
    %1200 = vmatprep.subr.bf16.mxu0 0
    %1201 = vmatpush1.bf16.msra.mxu0 %v487
    %1202 = vmatprep.subr.bf16.mxu0 0
    %1203 = vmatpush1.bf16.msra.mxu0 %v486
    %1204 = vmatprep.subr.bf16.mxu0 0
    %1205 = vmatpush1.bf16.msra.mxu0 %v485
    %1206 = vmatprep.subr.bf16.mxu0 0
    %1207 = vmatpush1.bf16.msra.mxu0 %v484
    %1208 = vmatprep.subr.bf16.mxu0 0
    %1209 = vmatpush1.bf16.msra.mxu0 %v483
    %1210 = vmatprep.subr.bf16.mxu0 0
    %1211 = vmatpush1.bf16.msra.mxu0 %v482
    %1212 = vmatprep.subr.bf16.mxu0 0
    %1213 = vmatpush2.bf16.msra.mxu0 0
    %1214 = vmatprep.subr.bf16.mxu0 0
    %1215 = vmatpush2.bf16.msra.mxu0 0
    %1216 = vmatprep.subr.bf16.mxu0 0
    %1217 = vmatpush2.bf16.msra.mxu0 0
    %1218 = vmatprep.subr.bf16.mxu0 0
    %1219 = vmatpush2.bf16.msra.mxu0 0
    %1220 = vmatprep.subr.bf16.mxu0 0
    %1221 = vmatpush2.bf16.msra.mxu0 0
    %1222 = vmatprep.subr.bf16.mxu0 0
    %1223 = vmatpush2.bf16.msra.mxu0 0
    %1224 = vmatprep.subr.bf16.mxu0 0
    %1225 = vmatpush2.bf16.msra.mxu0 0
    %1226 = vmatprep.subr.bf16.mxu0 0
    %1227 = vmatpush2.bf16.msra.mxu0 0
    %1228 = vmatprep.mubr.bf16.mxu0 0
    %1229 = vmatmul.mubr.bf16.gmra.mxu0 %v1153
    %v1230 = vpop.f32.mrf.mxu0
    %v1231 = vadd.f32 %v1191, %v1230
    %v1232 = vpop.f32.mrf.mxu0
    %v1233 = vpop.f32.mrf.mxu0
    %v1234 = vpop.f32.mrf.mxu0
    %1235 = vdwg.mxu0
    %v1236 = vadd.f32 %v1231, %v542
    %v1237 = vtanh.pop %v1236
    %1238 = vst [vmem:[%s359] sm:$0xff] %v1237
    %s1239 = scalar_lea.vmem [#allocation3], 20
    %v1240 = vld [vmem:[%s1239] sm:$0xf]
    %v1241 = vld [vmem:[#allocation2] sm:$0xff]
    %v1242 = vpack.c.bf16 %v1241, %v1241
    %1243 = vmatprep.subr.bf16.mxu0 0
    %1244 = vmatpush1.bf16.msra.mxu0 %v212
    %1245 = vmatprep.subr.bf16.mxu0 0
    %1246 = vmatpush1.bf16.msra.mxu0 %v211
    %1247 = vmatprep.subr.bf16.mxu0 0
    %1248 = vmatpush1.bf16.msra.mxu0 %v210
    %1249 = vmatprep.subr.bf16.mxu0 0
    %1250 = vmatpush1.bf16.msra.mxu0 %v209
    %1251 = vmatprep.subr.bf16.mxu0 0
    %1252 = vmatpush1.bf16.msra.mxu0 %v208
    %1253 = vmatprep.subr.bf16.mxu0 0
    %1254 = vmatpush1.bf16.msra.mxu0 %v207
    %1255 = vmatprep.subr.bf16.mxu0 0
    %1256 = vmatpush1.bf16.msra.mxu0 %v206
    %1257 = vmatprep.subr.bf16.mxu0 0
    %1258 = vmatpush1.bf16.msra.mxu0 %v205
    %1259 = vmatprep.subr.bf16.mxu0 0
    %1260 = vmatpush2.bf16.msra.mxu0 0
    %1261 = vmatprep.subr.bf16.mxu0 0
    %1262 = vmatpush2.bf16.msra.mxu0 0
    %1263 = vmatprep.subr.bf16.mxu0 0
    %1264 = vmatpush2.bf16.msra.mxu0 0
    %1265 = vmatprep.subr.bf16.mxu0 0
    %1266 = vmatpush2.bf16.msra.mxu0 0
    %1267 = vmatprep.subr.bf16.mxu0 0
    %1268 = vmatpush2.bf16.msra.mxu0 0
    %1269 = vmatprep.subr.bf16.mxu0 0
    %1270 = vmatpush2.bf16.msra.mxu0 0
    %1271 = vmatprep.subr.bf16.mxu0 0
    %1272 = vmatpush2.bf16.msra.mxu0 0
    %1273 = vmatprep.subr.bf16.mxu0 0
    %1274 = vmatpush2.bf16.msra.mxu0 0
    %1275 = vmatprep.mubr.bf16.mxu0 0
    %1276 = vmatmul.mubr.bf16.gmra.mxu0 %v1242
    %v1277 = vpop.f32.mrf.mxu0
    %v1278 = vadd.f32 0.0, %v1277
    %v1279 = vpop.f32.mrf.mxu0
    %v1280 = vpop.f32.mrf.mxu0
    %v1281 = vpop.f32.mrf.mxu0
    %1282 = vdwg.mxu0
    %1283 = vmatprep.subr.bf16.mxu0 0
    %1284 = vmatpush1.bf16.msra.mxu0 %v300
    %1285 = vmatprep.subr.bf16.mxu0 0
    %1286 = vmatpush1.bf16.msra.mxu0 %v299
    %1287 = vmatprep.subr.bf16.mxu0 0
    %1288 = vmatpush1.bf16.msra.mxu0 %v298
    %1289 = vmatprep.subr.bf16.mxu0 0
    %1290 = vmatpush1.bf16.msra.mxu0 %v297
    %1291 = vmatprep.subr.bf16.mxu0 0
    %1292 = vmatpush1.bf16.msra.mxu0 %v296
    %1293 = vmatprep.subr.bf16.mxu0 0
    %1294 = vmatpush1.bf16.msra.mxu0 %v295
    %1295 = vmatprep.subr.bf16.mxu0 0
    %1296 = vmatpush1.bf16.msra.mxu0 %v294
    %1297 = vmatprep.subr.bf16.mxu0 0
    %1298 = vmatpush1.bf16.msra.mxu0 %v293
    %1299 = vmatprep.subr.bf16.mxu0 0
    %1300 = vmatpush2.bf16.msra.mxu0 0
    %1301 = vmatprep.subr.bf16.mxu0 0
    %1302 = vmatpush2.bf16.msra.mxu0 0
    %1303 = vmatprep.subr.bf16.mxu0 0
    %1304 = vmatpush2.bf16.msra.mxu0 0
    %1305 = vmatprep.subr.bf16.mxu0 0
    %1306 = vmatpush2.bf16.msra.mxu0 0
    %1307 = vmatprep.subr.bf16.mxu0 0
    %1308 = vmatpush2.bf16.msra.mxu0 0
    %1309 = vmatprep.subr.bf16.mxu0 0
    %1310 = vmatpush2.bf16.msra.mxu0 0
    %1311 = vmatprep.subr.bf16.mxu0 0
    %1312 = vmatpush2.bf16.msra.mxu0 0
    %1313 = vmatprep.subr.bf16.mxu0 0
    %1314 = vmatpush2.bf16.msra.mxu0 0
    %1315 = vmatprep.mubr.bf16.mxu0 0
    %1316 = vmatmul.mubr.bf16.gmra.mxu0 %v1240
    %v1317 = vpop.f32.mrf.mxu0
    %v1318 = vadd.f32 %v1278, %v1317
    %v1319 = vpop.f32.mrf.mxu0
    %v1320 = vpop.f32.mrf.mxu0
    %v1321 = vpop.f32.mrf.mxu0
    %1322 = vdwg.mxu0
    %v1323 = vadd.f32 %v1318, %v353
    %v1324 = vtanh.pop %v1323
    %1325 = vst [vmem:[#allocation2] sm:$0xff] %v1324
    %v1326 = vpack.c.bf16 %v1324, %v1324
    %v1327 = vld [vmem:[%s359] sm:$0xff]
    %v1328 = vpack.c.bf16 %v1327, %v1327
    %1329 = vmatprep.subr.bf16.mxu0 0
    %1330 = vmatpush1.bf16.msra.mxu0 %v401
    %1331 = vmatprep.subr.bf16.mxu0 0
    %1332 = vmatpush1.bf16.msra.mxu0 %v400
    %1333 = vmatprep.subr.bf16.mxu0 0
    %1334 = vmatpush1.bf16.msra.mxu0 %v399
    %1335 = vmatprep.subr.bf16.mxu0 0
    %1336 = vmatpush1.bf16.msra.mxu0 %v398
    %1337 = vmatprep.subr.bf16.mxu0 0
    %1338 = vmatpush1.bf16.msra.mxu0 %v397
    %1339 = vmatprep.subr.bf16.mxu0 0
    %1340 = vmatpush1.bf16.msra.mxu0 %v396
    %1341 = vmatprep.subr.bf16.mxu0 0
    %1342 = vmatpush1.bf16.msra.mxu0 %v395
    %1343 = vmatprep.subr.bf16.mxu0 0
    %1344 = vmatpush1.bf16.msra.mxu0 %v394
    %1345 = vmatprep.subr.bf16.mxu0 0
    %1346 = vmatpush2.bf16.msra.mxu0 0
    %1347 = vmatprep.subr.bf16.mxu0 0
    %1348 = vmatpush2.bf16.msra.mxu0 0
    %1349 = vmatprep.subr.bf16.mxu0 0
    %1350 = vmatpush2.bf16.msra.mxu0 0
    %1351 = vmatprep.subr.bf16.mxu0 0
    %1352 = vmatpush2.bf16.msra.mxu0 0
    %1353 = vmatprep.subr.bf16.mxu0 0
    %1354 = vmatpush2.bf16.msra.mxu0 0
    %1355 = vmatprep.subr.bf16.mxu0 0
    %1356 = vmatpush2.bf16.msra.mxu0 0
    %1357 = vmatprep.subr.bf16.mxu0 0
    %1358 = vmatpush2.bf16.msra.mxu0 0
    %1359 = vmatprep.subr.bf16.mxu0 0
    %1360 = vmatpush2.bf16.msra.mxu0 0
    %1361 = vmatprep.mubr.bf16.mxu0 0
    %1362 = vmatmul.mubr.bf16.gmra.mxu0 %v1328
    %v1363 = vpop.f32.mrf.mxu0
    %v1364 = vadd.f32 0.0, %v1363
    %v1365 = vpop.f32.mrf.mxu0
    %v1366 = vpop.f32.mrf.mxu0
    %v1367 = vpop.f32.mrf.mxu0
    %1368 = vdwg.mxu0
    %1369 = vmatprep.subr.bf16.mxu0 0
    %1370 = vmatpush1.bf16.msra.mxu0 %v489
    %1371 = vmatprep.subr.bf16.mxu0 0
    %1372 = vmatpush1.bf16.msra.mxu0 %v488
    %1373 = vmatprep.subr.bf16.mxu0 0
    %1374 = vmatpush1.bf16.msra.mxu0 %v487
    %1375 = vmatprep.subr.bf16.mxu0 0
    %1376 = vmatpush1.bf16.msra.mxu0 %v486
    %1377 = vmatprep.subr.bf16.mxu0 0
    %1378 = vmatpush1.bf16.msra.mxu0 %v485
    %1379 = vmatprep.subr.bf16.mxu0 0
    %1380 = vmatpush1.bf16.msra.mxu0 %v484
    %1381 = vmatprep.subr.bf16.mxu0 0
    %1382 = vmatpush1.bf16.msra.mxu0 %v483
    %1383 = vmatprep.subr.bf16.mxu0 0
    %1384 = vmatpush1.bf16.msra.mxu0 %v482
    %1385 = vmatprep.subr.bf16.mxu0 0
    %1386 = vmatpush2.bf16.msra.mxu0 0
    %1387 = vmatprep.subr.bf16.mxu0 0
    %1388 = vmatpush2.bf16.msra.mxu0 0
    %1389 = vmatprep.subr.bf16.mxu0 0
    %1390 = vmatpush2.bf16.msra.mxu0 0
    %1391 = vmatprep.subr.bf16.mxu0 0
    %1392 = vmatpush2.bf16.msra.mxu0 0
    %1393 = vmatprep.subr.bf16.mxu0 0
    %1394 = vmatpush2.bf16.msra.mxu0 0
    %1395 = vmatprep.subr.bf16.mxu0 0
    %1396 = vmatpush2.bf16.msra.mxu0 0
    %1397 = vmatprep.subr.bf16.mxu0 0
    %1398 = vmatpush2.bf16.msra.mxu0 0
    %1399 = vmatprep.subr.bf16.mxu0 0
    %1400 = vmatpush2.bf16.msra.mxu0 0
    %1401 = vmatprep.mubr.bf16.mxu0 0
    %1402 = vmatmul.mubr.bf16.gmra.mxu0 %v1326
    %v1403 = vpop.f32.mrf.mxu0
    %v1404 = vadd.f32 %v1364, %v1403
    %v1405 = vpop.f32.mrf.mxu0
    %v1406 = vpop.f32.mrf.mxu0
    %v1407 = vpop.f32.mrf.mxu0
    %1408 = vdwg.mxu0
    %v1409 = vadd.f32 %v1404, %v542
    %v1410 = vtanh.pop %v1409
    %1411 = vst [vmem:[%s359] sm:$0xff] %v1410
    %s1412 = scalar_lea.vmem [#allocation3], 24
    %v1413 = vld [vmem:[%s1412] sm:$0xf]
    %v1414 = vld [vmem:[#allocation2] sm:$0xff]
    %v1415 = vpack.c.bf16 %v1414, %v1414
    %1416 = vmatprep.subr.bf16.mxu0 0
    %1417 = vmatpush1.bf16.msra.mxu0 %v212
    %1418 = vmatprep.subr.bf16.mxu0 0
    %1419 = vmatpush1.bf16.msra.mxu0 %v211
    %1420 = vmatprep.subr.bf16.mxu0 0
    %1421 = vmatpush1.bf16.msra.mxu0 %v210
    %1422 = vmatprep.subr.bf16.mxu0 0
    %1423 = vmatpush1.bf16.msra.mxu0 %v209
    %1424 = vmatprep.subr.bf16.mxu0 0
    %1425 = vmatpush1.bf16.msra.mxu0 %v208
    %1426 = vmatprep.subr.bf16.mxu0 0
    %1427 = vmatpush1.bf16.msra.mxu0 %v207
    %1428 = vmatprep.subr.bf16.mxu0 0
    %1429 = vmatpush1.bf16.msra.mxu0 %v206
    %1430 = vmatprep.subr.bf16.mxu0 0
    %1431 = vmatpush1.bf16.msra.mxu0 %v205
    %1432 = vmatprep.subr.bf16.mxu0 0
    %1433 = vmatpush2.bf16.msra.mxu0 0
    %1434 = vmatprep.subr.bf16.mxu0 0
    %1435 = vmatpush2.bf16.msra.mxu0 0
    %1436 = vmatprep.subr.bf16.mxu0 0
    %1437 = vmatpush2.bf16.msra.mxu0 0
    %1438 = vmatprep.subr.bf16.mxu0 0
    %1439 = vmatpush2.bf16.msra.mxu0 0
    %1440 = vmatprep.subr.bf16.mxu0 0
    %1441 = vmatpush2.bf16.msra.mxu0 0
    %1442 = vmatprep.subr.bf16.mxu0 0
    %1443 = vmatpush2.bf16.msra.mxu0 0
    %1444 = vmatprep.subr.bf16.mxu0 0
    %1445 = vmatpush2.bf16.msra.mxu0 0
    %1446 = vmatprep.subr.bf16.mxu0 0
    %1447 = vmatpush2.bf16.msra.mxu0 0
    %1448 = vmatprep.mubr.bf16.mxu0 0
    %1449 = vmatmul.mubr.bf16.gmra.mxu0 %v1415
    %v1450 = vpop.f32.mrf.mxu0
    %v1451 = vadd.f32 0.0, %v1450
    %v1452 = vpop.f32.mrf.mxu0
    %v1453 = vpop.f32.mrf.mxu0
    %v1454 = vpop.f32.mrf.mxu0
    %1455 = vdwg.mxu0
    %1456 = vmatprep.subr.bf16.mxu0 0
    %1457 = vmatpush1.bf16.msra.mxu0 %v300
    %1458 = vmatprep.subr.bf16.mxu0 0
    %1459 = vmatpush1.bf16.msra.mxu0 %v299
    %1460 = vmatprep.subr.bf16.mxu0 0
    %1461 = vmatpush1.bf16.msra.mxu0 %v298
    %1462 = vmatprep.subr.bf16.mxu0 0
    %1463 = vmatpush1.bf16.msra.mxu0 %v297
    %1464 = vmatprep.subr.bf16.mxu0 0
    %1465 = vmatpush1.bf16.msra.mxu0 %v296
    %1466 = vmatprep.subr.bf16.mxu0 0
    %1467 = vmatpush1.bf16.msra.mxu0 %v295
    %1468 = vmatprep.subr.bf16.mxu0 0
    %1469 = vmatpush1.bf16.msra.mxu0 %v294
    %1470 = vmatprep.subr.bf16.mxu0 0
    %1471 = vmatpush1.bf16.msra.mxu0 %v293
    %1472 = vmatprep.subr.bf16.mxu0 0
    %1473 = vmatpush2.bf16.msra.mxu0 0
    %1474 = vmatprep.subr.bf16.mxu0 0
    %1475 = vmatpush2.bf16.msra.mxu0 0
    %1476 = vmatprep.subr.bf16.mxu0 0
    %1477 = vmatpush2.bf16.msra.mxu0 0
    %1478 = vmatprep.subr.bf16.mxu0 0
    %1479 = vmatpush2.bf16.msra.mxu0 0
    %1480 = vmatprep.subr.bf16.mxu0 0
    %1481 = vmatpush2.bf16.msra.mxu0 0
    %1482 = vmatprep.subr.bf16.mxu0 0
    %1483 = vmatpush2.bf16.msra.mxu0 0
    %1484 = vmatprep.subr.bf16.mxu0 0
    %1485 = vmatpush2.bf16.msra.mxu0 0
    %1486 = vmatprep.subr.bf16.mxu0 0
    %1487 = vmatpush2.bf16.msra.mxu0 0
    %1488 = vmatprep.mubr.bf16.mxu0 0
    %1489 = vmatmul.mubr.bf16.gmra.mxu0 %v1413
    %v1490 = vpop.f32.mrf.mxu0
    %v1491 = vadd.f32 %v1451, %v1490
    %v1492 = vpop.f32.mrf.mxu0
    %v1493 = vpop.f32.mrf.mxu0
    %v1494 = vpop.f32.mrf.mxu0
    %1495 = vdwg.mxu0
    %v1496 = vadd.f32 %v1491, %v353
    %v1497 = vtanh.pop %v1496
    %1498 = vst [vmem:[#allocation2] sm:$0xff] %v1497
    %v1499 = vpack.c.bf16 %v1497, %v1497
    %v1500 = vld [vmem:[%s359] sm:$0xff]
    %v1501 = vpack.c.bf16 %v1500, %v1500
    %1502 = vmatprep.subr.bf16.mxu0 0
    %1503 = vmatpush1.bf16.msra.mxu0 %v401
    %1504 = vmatprep.subr.bf16.mxu0 0
    %1505 = vmatpush1.bf16.msra.mxu0 %v400
    %1506 = vmatprep.subr.bf16.mxu0 0
    %1507 = vmatpush1.bf16.msra.mxu0 %v399
    %1508 = vmatprep.subr.bf16.mxu0 0
    %1509 = vmatpush1.bf16.msra.mxu0 %v398
    %1510 = vmatprep.subr.bf16.mxu0 0
    %1511 = vmatpush1.bf16.msra.mxu0 %v397
    %1512 = vmatprep.subr.bf16.mxu0 0
    %1513 = vmatpush1.bf16.msra.mxu0 %v396
    %1514 = vmatprep.subr.bf16.mxu0 0
    %1515 = vmatpush1.bf16.msra.mxu0 %v395
    %1516 = vmatprep.subr.bf16.mxu0 0
    %1517 = vmatpush1.bf16.msra.mxu0 %v394
    %1518 = vmatprep.subr.bf16.mxu0 0
    %1519 = vmatpush2.bf16.msra.mxu0 0
    %1520 = vmatprep.subr.bf16.mxu0 0
    %1521 = vmatpush2.bf16.msra.mxu0 0
    %1522 = vmatprep.subr.bf16.mxu0 0
    %1523 = vmatpush2.bf16.msra.mxu0 0
    %1524 = vmatprep.subr.bf16.mxu0 0
    %1525 = vmatpush2.bf16.msra.mxu0 0
    %1526 = vmatprep.subr.bf16.mxu0 0
    %1527 = vmatpush2.bf16.msra.mxu0 0
    %1528 = vmatprep.subr.bf16.mxu0 0
    %1529 = vmatpush2.bf16.msra.mxu0 0
    %1530 = vmatprep.subr.bf16.mxu0 0
    %1531 = vmatpush2.bf16.msra.mxu0 0
    %1532 = vmatprep.subr.bf16.mxu0 0
    %1533 = vmatpush2.bf16.msra.mxu0 0
    %1534 = vmatprep.mubr.bf16.mxu0 0
    %1535 = vmatmul.mubr.bf16.gmra.mxu0 %v1501
    %v1536 = vpop.f32.mrf.mxu0
    %v1537 = vadd.f32 0.0, %v1536
    %v1538 = vpop.f32.mrf.mxu0
    %v1539 = vpop.f32.mrf.mxu0
    %v1540 = vpop.f32.mrf.mxu0
    %1541 = vdwg.mxu0
    %1542 = vmatprep.subr.bf16.mxu0 0
    %1543 = vmatpush1.bf16.msra.mxu0 %v489
    %1544 = vmatprep.subr.bf16.mxu0 0
    %1545 = vmatpush1.bf16.msra.mxu0 %v488
    %1546 = vmatprep.subr.bf16.mxu0 0
    %1547 = vmatpush1.bf16.msra.mxu0 %v487
    %1548 = vmatprep.subr.bf16.mxu0 0
    %1549 = vmatpush1.bf16.msra.mxu0 %v486
    %1550 = vmatprep.subr.bf16.mxu0 0
    %1551 = vmatpush1.bf16.msra.mxu0 %v485
    %1552 = vmatprep.subr.bf16.mxu0 0
    %1553 = vmatpush1.bf16.msra.mxu0 %v484
    %1554 = vmatprep.subr.bf16.mxu0 0
    %1555 = vmatpush1.bf16.msra.mxu0 %v483
    %1556 = vmatprep.subr.bf16.mxu0 0
    %1557 = vmatpush1.bf16.msra.mxu0 %v482
    %1558 = vmatprep.subr.bf16.mxu0 0
    %1559 = vmatpush2.bf16.msra.mxu0 0
    %1560 = vmatprep.subr.bf16.mxu0 0
    %1561 = vmatpush2.bf16.msra.mxu0 0
    %1562 = vmatprep.subr.bf16.mxu0 0
    %1563 = vmatpush2.bf16.msra.mxu0 0
    %1564 = vmatprep.subr.bf16.mxu0 0
    %1565 = vmatpush2.bf16.msra.mxu0 0
    %1566 = vmatprep.subr.bf16.mxu0 0
    %1567 = vmatpush2.bf16.msra.mxu0 0
    %1568 = vmatprep.subr.bf16.mxu0 0
    %1569 = vmatpush2.bf16.msra.mxu0 0
    %1570 = vmatprep.subr.bf16.mxu0 0
    %1571 = vmatpush2.bf16.msra.mxu0 0
    %1572 = vmatprep.subr.bf16.mxu0 0
    %1573 = vmatpush2.bf16.msra.mxu0 0
    %1574 = vmatprep.mubr.bf16.mxu0 0
    %1575 = vmatmul.mubr.bf16.gmra.mxu0 %v1499
    %v1576 = vpop.f32.mrf.mxu0
    %v1577 = vadd.f32 %v1537, %v1576
    %v1578 = vpop.f32.mrf.mxu0
    %v1579 = vpop.f32.mrf.mxu0
    %v1580 = vpop.f32.mrf.mxu0
    %1581 = vdwg.mxu0
    %v1582 = vadd.f32 %v1577, %v542
    %v1583 = vtanh.pop %v1582
    %1584 = vst [vmem:[%s359] sm:$0xff] %v1583
    %s1585 = scalar_lea.vmem [#allocation3], 28
    %v1586 = vld [vmem:[%s1585] sm:$0xf]
    %v1587 = vld [vmem:[#allocation2] sm:$0xff]
    %v1588 = vpack.c.bf16 %v1587, %v1587
    %1589 = vmatprep.subr.bf16.mxu0 0
    %1590 = vmatpush1.bf16.msra.mxu0 %v212
    %1591 = vmatprep.subr.bf16.mxu0 0
    %1592 = vmatpush1.bf16.msra.mxu0 %v211
    %1593 = vmatprep.subr.bf16.mxu0 0
    %1594 = vmatpush1.bf16.msra.mxu0 %v210
    %1595 = vmatprep.subr.bf16.mxu0 0
    %1596 = vmatpush1.bf16.msra.mxu0 %v209
    %1597 = vmatprep.subr.bf16.mxu0 0
    %1598 = vmatpush1.bf16.msra.mxu0 %v208
    %1599 = vmatprep.subr.bf16.mxu0 0
    %1600 = vmatpush1.bf16.msra.mxu0 %v207
    %1601 = vmatprep.subr.bf16.mxu0 0
    %1602 = vmatpush1.bf16.msra.mxu0 %v206
    %1603 = vmatprep.subr.bf16.mxu0 0
    %1604 = vmatpush1.bf16.msra.mxu0 %v205
    %1605 = vmatprep.subr.bf16.mxu0 0
    %1606 = vmatpush2.bf16.msra.mxu0 0
    %1607 = vmatprep.subr.bf16.mxu0 0
    %1608 = vmatpush2.bf16.msra.mxu0 0
    %1609 = vmatprep.subr.bf16.mxu0 0
    %1610 = vmatpush2.bf16.msra.mxu0 0
    %1611 = vmatprep.subr.bf16.mxu0 0
    %1612 = vmatpush2.bf16.msra.mxu0 0
    %1613 = vmatprep.subr.bf16.mxu0 0
    %1614 = vmatpush2.bf16.msra.mxu0 0
    %1615 = vmatprep.subr.bf16.mxu0 0
    %1616 = vmatpush2.bf16.msra.mxu0 0
    %1617 = vmatprep.subr.bf16.mxu0 0
    %1618 = vmatpush2.bf16.msra.mxu0 0
    %1619 = vmatprep.subr.bf16.mxu0 0
    %1620 = vmatpush2.bf16.msra.mxu0 0
    %1621 = vmatprep.mubr.bf16.mxu0 0
    %1622 = vmatmul.mubr.bf16.gmra.mxu0 %v1588
    %v1623 = vpop.f32.mrf.mxu0
    %v1624 = vadd.f32 0.0, %v1623
    %v1625 = vpop.f32.mrf.mxu0
    %v1626 = vpop.f32.mrf.mxu0
    %v1627 = vpop.f32.mrf.mxu0
    %1628 = vdwg.mxu0
    %1629 = vmatprep.subr.bf16.mxu0 0
    %1630 = vmatpush1.bf16.msra.mxu0 %v300
    %1631 = vmatprep.subr.bf16.mxu0 0
    %1632 = vmatpush1.bf16.msra.mxu0 %v299
    %1633 = vmatprep.subr.bf16.mxu0 0
    %1634 = vmatpush1.bf16.msra.mxu0 %v298
    %1635 = vmatprep.subr.bf16.mxu0 0
    %1636 = vmatpush1.bf16.msra.mxu0 %v297
    %1637 = vmatprep.subr.bf16.mxu0 0
    %1638 = vmatpush1.bf16.msra.mxu0 %v296
    %1639 = vmatprep.subr.bf16.mxu0 0
    %1640 = vmatpush1.bf16.msra.mxu0 %v295
    %1641 = vmatprep.subr.bf16.mxu0 0
    %1642 = vmatpush1.bf16.msra.mxu0 %v294
    %1643 = vmatprep.subr.bf16.mxu0 0
    %1644 = vmatpush1.bf16.msra.mxu0 %v293
    %1645 = vmatprep.subr.bf16.mxu0 0
    %1646 = vmatpush2.bf16.msra.mxu0 0
    %1647 = vmatprep.subr.bf16.mxu0 0
    %1648 = vmatpush2.bf16.msra.mxu0 0
    %1649 = vmatprep.subr.bf16.mxu0 0
    %1650 = vmatpush2.bf16.msra.mxu0 0
    %1651 = vmatprep.subr.bf16.mxu0 0
    %1652 = vmatpush2.bf16.msra.mxu0 0
    %1653 = vmatprep.subr.bf16.mxu0 0
    %1654 = vmatpush2.bf16.msra.mxu0 0
    %1655 = vmatprep.subr.bf16.mxu0 0
    %1656 = vmatpush2.bf16.msra.mxu0 0
    %1657 = vmatprep.subr.bf16.mxu0 0
    %1658 = vmatpush2.bf16.msra.mxu0 0
    %1659 = vmatprep.subr.bf16.mxu0 0
    %1660 = vmatpush2.bf16.msra.mxu0 0
    %1661 = vmatprep.mubr.bf16.mxu0 0
    %1662 = vmatmul.mubr.bf16.gmra.mxu0 %v1586
    %v1663 = vpop.f32.mrf.mxu0
    %v1664 = vadd.f32 %v1624, %v1663
    %v1665 = vpop.f32.mrf.mxu0
    %v1666 = vpop.f32.mrf.mxu0
    %v1667 = vpop.f32.mrf.mxu0
    %1668 = vdwg.mxu0
    %v1669 = vadd.f32 %v1664, %v353
    %v1670 = vtanh.pop %v1669
    %1671 = vst [vmem:[#allocation2] sm:$0xff] %v1670
    %v1672 = vpack.c.bf16 %v1670, %v1670
    %v1673 = vld [vmem:[%s359] sm:$0xff]
    %v1674 = vpack.c.bf16 %v1673, %v1673
    %1675 = vmatprep.subr.bf16.mxu0 0
    %1676 = vmatpush1.bf16.msra.mxu0 %v401
    %1677 = vmatprep.subr.bf16.mxu0 0
    %1678 = vmatpush1.bf16.msra.mxu0 %v400
    %1679 = vmatprep.subr.bf16.mxu0 0
    %1680 = vmatpush1.bf16.msra.mxu0 %v399
    %1681 = vmatprep.subr.bf16.mxu0 0
    %1682 = vmatpush1.bf16.msra.mxu0 %v398
    %1683 = vmatprep.subr.bf16.mxu0 0
    %1684 = vmatpush1.bf16.msra.mxu0 %v397
    %1685 = vmatprep.subr.bf16.mxu0 0
    %1686 = vmatpush1.bf16.msra.mxu0 %v396
    %1687 = vmatprep.subr.bf16.mxu0 0
    %1688 = vmatpush1.bf16.msra.mxu0 %v395
    %1689 = vmatprep.subr.bf16.mxu0 0
    %1690 = vmatpush1.bf16.msra.mxu0 %v394
    %1691 = vmatprep.subr.bf16.mxu0 0
    %1692 = vmatpush2.bf16.msra.mxu0 0
    %1693 = vmatprep.subr.bf16.mxu0 0
    %1694 = vmatpush2.bf16.msra.mxu0 0
    %1695 = vmatprep.subr.bf16.mxu0 0
    %1696 = vmatpush2.bf16.msra.mxu0 0
    %1697 = vmatprep.subr.bf16.mxu0 0
    %1698 = vmatpush2.bf16.msra.mxu0 0
    %1699 = vmatprep.subr.bf16.mxu0 0
    %1700 = vmatpush2.bf16.msra.mxu0 0
    %1701 = vmatprep.subr.bf16.mxu0 0
    %1702 = vmatpush2.bf16.msra.mxu0 0
    %1703 = vmatprep.subr.bf16.mxu0 0
    %1704 = vmatpush2.bf16.msra.mxu0 0
    %1705 = vmatprep.subr.bf16.mxu0 0
    %1706 = vmatpush2.bf16.msra.mxu0 0
    %1707 = vmatprep.mubr.bf16.mxu0 0
    %1708 = vmatmul.mubr.bf16.gmra.mxu0 %v1674
    %v1709 = vpop.f32.mrf.mxu0
    %v1710 = vadd.f32 0.0, %v1709
    %v1711 = vpop.f32.mrf.mxu0
    %v1712 = vpop.f32.mrf.mxu0
    %v1713 = vpop.f32.mrf.mxu0
    %1714 = vdwg.mxu0
    %1715 = vmatprep.subr.bf16.mxu0 0
    %1716 = vmatpush1.bf16.msra.mxu0 %v489
    %1717 = vmatprep.subr.bf16.mxu0 0
    %1718 = vmatpush1.bf16.msra.mxu0 %v488
    %1719 = vmatprep.subr.bf16.mxu0 0
    %1720 = vmatpush1.bf16.msra.mxu0 %v487
    %1721 = vmatprep.subr.bf16.mxu0 0
    %1722 = vmatpush1.bf16.msra.mxu0 %v486
    %1723 = vmatprep.subr.bf16.mxu0 0
    %1724 = vmatpush1.bf16.msra.mxu0 %v485
    %1725 = vmatprep.subr.bf16.mxu0 0
    %1726 = vmatpush1.bf16.msra.mxu0 %v484
    %1727 = vmatprep.subr.bf16.mxu0 0
    %1728 = vmatpush1.bf16.msra.mxu0 %v483
    %1729 = vmatprep.subr.bf16.mxu0 0
    %1730 = vmatpush1.bf16.msra.mxu0 %v482
    %1731 = vmatprep.subr.bf16.mxu0 0
    %1732 = vmatpush2.bf16.msra.mxu0 0
    %1733 = vmatprep.subr.bf16.mxu0 0
    %1734 = vmatpush2.bf16.msra.mxu0 0
    %1735 = vmatprep.subr.bf16.mxu0 0
    %1736 = vmatpush2.bf16.msra.mxu0 0
    %1737 = vmatprep.subr.bf16.mxu0 0
    %1738 = vmatpush2.bf16.msra.mxu0 0
    %1739 = vmatprep.subr.bf16.mxu0 0
    %1740 = vmatpush2.bf16.msra.mxu0 0
    %1741 = vmatprep.subr.bf16.mxu0 0
    %1742 = vmatpush2.bf16.msra.mxu0 0
    %1743 = vmatprep.subr.bf16.mxu0 0
    %1744 = vmatpush2.bf16.msra.mxu0 0
    %1745 = vmatprep.subr.bf16.mxu0 0
    %1746 = vmatpush2.bf16.msra.mxu0 0
    %1747 = vmatprep.mubr.bf16.mxu0 0
    %1748 = vmatmul.mubr.bf16.gmra.mxu0 %v1672
    %v1749 = vpop.f32.mrf.mxu0
    %v1750 = vadd.f32 %v1710, %v1749
    %v1751 = vpop.f32.mrf.mxu0
    %v1752 = vpop.f32.mrf.mxu0
    %v1753 = vpop.f32.mrf.mxu0
    %1754 = vdwg.mxu0
    %v1755 = vadd.f32 %v1750, %v542
    %v1756 = vtanh.pop %v1755
    %1757 = vst [vmem:[%s359] sm:$0xff] %v1756
    // Predicated region
    $region54: #{tpu_custom_call.1} parent=1 // pred_check
      %p1758 = pneg %p96
    $region55: #{tpu_custom_call.1} parent=1 // pred_check_branch
      %1760 = sbr.rel (%p1758) target = $region57
    $region56: #{tpu_custom_call.1} parent=1 // pred_region
      %v1761 = vld [vmem:[%s359] sm:$0xff]
      %v1762 = vpack.c.bf16 %v1761, %v1761
      %v1763 = vld [vmem:[#allocation11] sm:$0xf]
      %v1764 = vld [vmem:[#allocation11 + $0x4] sm:$0xf]
      %v1765 = vld [vmem:[#allocation11 + $0x8] sm:$0xf]
      %v1766 = vld [vmem:[#allocation11 + $0xc] sm:$0xf]
      %v1767 = vld [vmem:[#allocation11 + $0x10] sm:$0xf]
      %v1768 = vld [vmem:[#allocation11 + $0x14] sm:$0xf]
      %v1769 = vld [vmem:[#allocation11 + $0x18] sm:$0xf]
      %v1770 = vld [vmem:[#allocation11 + $0x1c] sm:$0xf]
      %v1771 = vld [vmem:[#allocation11 + $0x20] sm:$0xf]
      %v1772 = vld [vmem:[#allocation11 + $0x24] sm:$0xf]
      %v1773 = vld [vmem:[#allocation11 + $0x28] sm:$0xf]
      %v1774 = vld [vmem:[#allocation11 + $0x2c] sm:$0xf]
      %v1775 = vld [vmem:[#allocation11 + $0x30] sm:$0xf]
      %v1776 = vld [vmem:[#allocation11 + $0x34] sm:$0xf]
      %v1777 = vld [vmem:[#allocation11 + $0x38] sm:$0xf]
      %v1778 = vld [vmem:[#allocation11 + $0x3c] sm:$0xf]
      %v1779 = vld [vmem:[%s6] sm:$0x1]
      %v1781 = vlaneseq
      %v1782 = vshrl.u32 %v1781, 7
      %v1783 = vsub.s32 0, %v1782
      %v1784 = vrot.slane %v1779, %v1783
      %v1802 = vunpack.c.l.b16 %v1763
      %v1803 = vunpack.c.l.b16 %v1764
      %v1804 = vunpack.c.l.b16 %v1765
      %v1805 = vunpack.c.l.b16 %v1766
      %v1806 = vunpack.c.l.b16 %v1767
      %v1807 = vunpack.c.l.b16 %v1768
      %v1808 = vunpack.c.l.b16 %v1769
      %v1809 = vunpack.c.l.b16 %v1770
      %v1810 = vunpack.c.l.b16 %v1771
      %v1811 = vunpack.c.l.b16 %v1772
      %v1812 = vunpack.c.l.b16 %v1773
      %v1813 = vunpack.c.l.b16 %v1774
      %v1814 = vunpack.c.l.b16 %v1775
      %v1815 = vunpack.c.l.b16 %v1776
      %v1816 = vunpack.c.l.b16 %v1777
      %v1817 = vunpack.c.l.b16 %v1778
      %v1818 = vpack.c.b16 %v1803, %v1802
      %v1819 = vpack.c.b16 %v1805, %v1804
      %v1820 = vpack.c.b16 %v1807, %v1806
      %v1821 = vpack.c.b16 %v1809, %v1808
      %v1822 = vpack.c.b16 %v1811, %v1810
      %v1823 = vpack.c.b16 %v1813, %v1812
      %v1824 = vpack.c.b16 %v1815, %v1814
      %v1825 = vpack.c.b16 %v1817, %v1816
      %1834 = vmatprep.subr.bf16.mxu0 0
      %1835 = vmatpush1.bf16.msra.mxu0 %v1825
      %1836 = vmatprep.subr.bf16.mxu0 0
      %1837 = vmatpush1.bf16.msra.mxu0 %v1824
      %1838 = vmatprep.subr.bf16.mxu0 0
      %1839 = vmatpush1.bf16.msra.mxu0 %v1823
      %1840 = vmatprep.subr.bf16.mxu0 0
      %1841 = vmatpush1.bf16.msra.mxu0 %v1822
      %1842 = vmatprep.subr.bf16.mxu0 0
      %1843 = vmatpush1.bf16.msra.mxu0 %v1821
      %1844 = vmatprep.subr.bf16.mxu0 0
      %1845 = vmatpush1.bf16.msra.mxu0 %v1820
      %1846 = vmatprep.subr.bf16.mxu0 0
      %1847 = vmatpush1.bf16.msra.mxu0 %v1819
      %1848 = vmatprep.subr.bf16.mxu0 0
      %1849 = vmatpush1.bf16.msra.mxu0 %v1818
      %1850 = vmatprep.subr.bf16.mxu0 0
      %1851 = vmatpush2.bf16.msra.mxu0 0
      %1852 = vmatprep.subr.bf16.mxu0 0
      %1853 = vmatpush2.bf16.msra.mxu0 0
      %1854 = vmatprep.subr.bf16.mxu0 0
      %1855 = vmatpush2.bf16.msra.mxu0 0
      %1856 = vmatprep.subr.bf16.mxu0 0
      %1857 = vmatpush2.bf16.msra.mxu0 0
      %1858 = vmatprep.subr.bf16.mxu0 0
      %1859 = vmatpush2.bf16.msra.mxu0 0
      %1860 = vmatprep.subr.bf16.mxu0 0
      %1861 = vmatpush2.bf16.msra.mxu0 0
      %1862 = vmatprep.subr.bf16.mxu0 0
      %1863 = vmatpush2.bf16.msra.mxu0 0
      %1864 = vmatprep.subr.bf16.mxu0 0
      %1865 = vmatpush2.bf16.msra.mxu0 0
      %1866 = vmatprep.mubr.bf16.mxu0 0
      %1867 = vmatmul.mubr.bf16.gmra.mxu0 %v1762
      %v1868 = vpop.f32.mrf.mxu0
      %v1869 = vadd.f32 %v1784, %v1868
      %v1870 = vpop.f32.mrf.mxu0
      %v1871 = vpop.f32.mrf.mxu0
      %v1872 = vpop.f32.mrf.mxu0
      %1873 = vdwg.mxu0
      %1874 = vst [vmem:[#allocation12] sm:$0xff] %v1869
    $region57: #{tpu_custom_call.1} parent=1 // pred_fallthru
      _
    // Predicated region
    $region58: #{tpu_custom_call.1} parent=1 // pred_check
      _
    $region59: #{tpu_custom_call.1} parent=1 // pred_check_branch
      %1876 = sbr.rel (0) target = $region61
    $region60: #{tpu_custom_call.1} parent=1 // pred_region
      %s1878 = ssub.s32 128, 128
      %1879 = vsyncadd [#allocation5], %s1878
      %s1881 = sshll.u32 [#allocation12], 4
      %s1882 = int_to_ptr.vmem [resolvable:$true] %s1881
      %1884 = dma.vmem_to_hbm [thread:$0]  %s1882, 128, %s7, [#allocation5]
    $region61: #{tpu_custom_call.1} parent=1 // pred_fallthru
      _
    // Predicated region
    $region62: #{tpu_custom_call.1} parent=1 // pred_check
      _
    $region63: #{tpu_custom_call.1} parent=1 // pred_check_branch
      %1886 = sbr.rel (0) target = $region65
    $region64: #{tpu_custom_call.1} parent=1 // pred_region
      %1887 = dma.done [#allocation5], 128
    $region65: #{tpu_custom_call.1} parent=1 // pred_fallthru
      _
    %1888 = vsyncpa [#allocation4], 1
    %1889 = vsyncpa [#allocation7], 1
    %1890 = vsyncpa [#allocation10], 1
    %1891 = vsyncpa [#allocation5], 1

</llo_original>
